<compile_context>
chip_gen: v6e
topology: v6e:2x2x1
jax: 0.10.0
libtpu: 0.0.40
codegen_flags: <defaults>
</compile_context>

<pallas_src>
import functools

import jax
import jax.numpy as jnp
from jax.experimental import pallas as pl
from jax.experimental.pallas import tpu as pltpu


def _softplus(x):
    # Branch-free stable softplus == jax.nn.softplus == logaddexp(x, 0);
    # matches torch.nn.functional.softplus (threshold=20) to float precision.
    return jnp.maximum(x, 0.0) + jnp.log1p(jnp.exp(-jnp.abs(x)))


def _make_kernel(n_steps, compute_dtype):
    """Batch-major kernel: every block's second-minor dim is the batch tile."""
    cdt = compute_dtype

    def kernel(t_ref, x_ref, e1_ref, b1_ref, w1_ref,
               e2_ref, b2_ref, w2_ref, w3_ref, b3_ref, o_ref):
        # t_ref : (tb, 1) int32      x_ref : (tb, D)
        # e1_ref: (n_steps, H1)      b1_ref: (1, H1)     w1_ref: (H1, D)
        # e2_ref: (n_steps, H2)      b2_ref: (1, H2)     w2_ref: (H2, H1)
        # w3_ref: (D, H2)            b3_ref: (1, D)      o_ref : (tb, D)
        tb = x_ref.shape[0]
        trans_b = (((1,), (1,)), ((), ()))  # a @ b.T (PyTorch Linear layout)

        # ---- in-kernel embedding gather: one-hot(t) matmul (MXU has slack).
        # Out-of-range t silently yields zero gates (no raw index is formed).
        steps = jax.lax.broadcasted_iota(jnp.int32, (tb, n_steps), 1)
        onehot = (steps == t_ref[...]).astype(cdt)                    # (tb, n_steps)

        # ---- layer 1: ConditionalLinear + softplus --------------------------
        h = jax.lax.dot_general(x_ref[...].astype(cdt), w1_ref[...].astype(cdt),
                                trans_b, preferred_element_type=jnp.float32)
        g1 = jnp.dot(onehot, e1_ref[...].astype(cdt),
                     preferred_element_type=jnp.float32)              # (tb, H1)
        h = _softplus(g1 * (h + b1_ref[...]))

        # ---- hidden layer: ConditionalLinear + softplus ----------------------
        h2 = jax.lax.dot_general(h.astype(cdt), w2_ref[...].astype(cdt),
                                 trans_b, preferred_element_type=jnp.float32)
        g2 = jnp.dot(onehot, e2_ref[...].astype(cdt),
                     preferred_element_type=jnp.float32)              # (tb, H2)
        h2 = _softplus(g2 * (h2 + b2_ref[...]))

        # ---- output: plain Linear -------------------------------------------
        out = jax.lax.dot_general(h2.astype(cdt), w3_ref[...].astype(cdt),
                                  trans_b, preferred_element_type=jnp.float32)
        o_ref[...] = (out + b3_ref[...]).astype(o_ref.dtype)          # (tb, D)

    return kernel


@functools.partial(jax.jit, static_argnames=("tile_b", "bf16_matmul"))
def score_model_forward(x, t, params, *, tile_b=2048, bf16_matmul=False):
    """Forward pass of score_model_mlp_with_condlinear.

    x: (B, x_dim) float32
    t: (B,) integer timestep indices in [0, n_steps)
    params: dict w1,b1,e1, w2,b2,e2, w3,b3 (weights in PyTorch (out,in) layout)
    """
    B, D = x.shape
    H1 = params["w1"].shape[0]
    H2 = params["w2"].shape[0]
    n_steps = params["e1"].shape[0]

    def ceil_to(v, m):
        return -(-v // m) * m

    # --- batch tiling: large tiles to amortize per-step overhead, >=2 parallel
    # grid steps whenever the (padded) batch allows it (v7x megacore). --------
    B_pad = ceil_to(B, 128)
    tb = min(ceil_to(max(tile_b, 128), 128), B_pad)
    if tb >= B_pad and B_pad >= 256:
        tb = ceil_to(B_pad // 2, 128)
    B_pad = ceil_to(B, tb)

    t2d = t.astype(jnp.int32).reshape(B, 1)
    if B_pad != B:
        # Pad with zeros (t=0 is a valid index); padded rows are sliced off below.
        x = jnp.pad(x, ((0, B_pad - B), (0, 0)))
        t2d = jnp.pad(t2d, ((0, B_pad - B), (0, 0)))

    b1 = params["b1"].reshape(1, H1)
    b2 = params["b2"].reshape(1, H2)
    b3 = params["b3"].reshape(1, D)

    grid = (B_pad // tb,)
    kernel = _make_kernel(n_steps, jnp.bfloat16 if bf16_matmul else jnp.float32)

    flops = 2 * B_pad * (D * H1 + H1 * H2 + H2 * D + n_steps * (H1 + H2))
    bytes_accessed = 4 * (2 * B_pad * D + B_pad
                          + params["e1"].size + params["e2"].size
                          + params["w1"].size + params["w2"].size
                          + params["w3"].size + H1 + H2 + D)
    cost = pl.CostEstimate(flops=flops,
                           transcendentals=2 * B_pad * (H1 + H2),
                           bytes_accessed=bytes_accessed)

    out = pl.pallas_call(
        kernel,
        out_shape=jax.ShapeDtypeStruct((B_pad, D), x.dtype),
        grid_spec=pltpu.PrefetchScalarGridSpec(
            num_scalar_prefetch=0,
            grid=grid,
            in_specs=[
                pl.BlockSpec((tb, 1), lambda i: (i, 0)),              # t
                pl.BlockSpec((tb, D), lambda i: (i, 0)),              # x
                pl.BlockSpec((n_steps, H1), lambda i: (0, 0)),        # e1 (lane-dense)
                pl.BlockSpec((1, H1), lambda i: (0, 0)),              # b1
                pl.BlockSpec(params["w1"].shape, lambda i: (0, 0)),   # w1
                pl.BlockSpec((n_steps, H2), lambda i: (0, 0)),        # e2 (lane-dense)
                pl.BlockSpec((1, H2), lambda i: (0, 0)),              # b2
                pl.BlockSpec(params["w2"].shape, lambda i: (0, 0)),   # w2
                pl.BlockSpec(params["w3"].shape, lambda i: (0, 0)),   # w3
                pl.BlockSpec((1, D), lambda i: (0, 0)),               # b3
            ],
            out_specs=pl.BlockSpec((tb, D), lambda i: (i, 0)),
        ),
        compiler_params=pltpu.CompilerParams(
            dimension_semantics=("parallel",),
            vmem_limit_bytes=32 * 1024 * 1024),
        cost_estimate=cost,
    )(t2d, x, params["e1"], b1, params["w1"],
      params["e2"], b2, params["w2"], params["w3"], b3)

    return out[:B] if B_pad != B else out


def init_params(key, x_dim, n_steps, hidden_dim=(128, 128)):
    """Deterministic parameter init mirroring the PyTorch module shapes
    (weights kept in PyTorch (out_features, in_features) layout)."""
    ks = jax.random.split(key, 8)
    h0, h1 = hidden_dim

    def linear_init(kw, kb, fan_in, fan_out):
        bound = 1.0 / jnp.sqrt(fan_in)
        w = jax.random.uniform(kw, (fan_out, fan_in), jnp.float32, -bound, bound)
        b = jax.random.uniform(kb, (fan_out,), jnp.float32, -bound, bound)
        return w, b

    w1, b1 = linear_init(ks[0], ks[1], x_dim, h0)
    e1 = jax.random.uniform(ks[2], (n_steps, h0), jnp.float32)   # embed.weight.uniform_()
    w2, b2 = linear_init(ks[3], ks[4], h0, h1)
    e2 = jax.random.uniform(ks[5], (n_steps, h1), jnp.float32)
    w3, b3 = linear_init(ks[6], ks[7], h1, x_dim)
    return dict(w1=w1, b1=b1, e1=e1, w2=w2, b2=b2, e2=e2, w3=w3, b3=b3)


def reference_forward(x, t, params):
    """Pure-JAX reference for verification (PyTorch semantics)."""
    g1 = params["e1"][t]
    g2 = params["e2"][t]
    h = jax.nn.softplus(g1 * (x @ params["w1"].T + params["b1"]))
    h = jax.nn.softplus(g2 * (h @ params["w2"].T + params["b2"]))
    return h @ params["w3"].T + params["b3"]


if __name__ == "__main__":
    key = jax.random.PRNGKey(0)
    k_param, k_x, k_t = jax.random.split(key, 3)

    # Small but lane/sublane-friendly shapes: B multiple of 256 gives a
    # 2-step parallel grid even with the large default tile.
    B, x_dim, n_steps = 256, 8, 10
    hidden_dim = (128, 128)

    params = init_params(k_param, x_dim, n_steps, hidden_dim)
    x = jax.random.normal(k_x, (B, x_dim), jnp.float32)
    t = jax.random.randint(k_t, (B,), 0, n_steps, jnp.int32)

    out = score_model_forward(x, t, params)
    out = jax.block_until_ready(out)

    ref = reference_forward(x, t, params)
    assert out.shape == (B, x_dim)
    assert jnp.allclose(out, ref, atol=5e-5, rtol=5e-5), "mismatch vs reference"

    print("KERNEL_OK")
</pallas_src>

<mosaic_0001>
module attributes {stable_mosaic.version = 11 : i64} {
  func.func @kernel(%arg0: i32, %arg1: memref<128x1xi32, #tpu.memory_space<vmem>>, %arg2: memref<128x8xf32, #tpu.memory_space<vmem>>, %arg3: memref<10x128xf32, #tpu.memory_space<vmem>>, %arg4: memref<1x128xf32, #tpu.memory_space<vmem>>, %arg5: memref<128x8xf32, #tpu.memory_space<vmem>>, %arg6: memref<10x128xf32, #tpu.memory_space<vmem>>, %arg7: memref<1x128xf32, #tpu.memory_space<vmem>>, %arg8: memref<128x128xf32, #tpu.memory_space<vmem>>, %arg9: memref<8x128xf32, #tpu.memory_space<vmem>>, %arg10: memref<1x8xf32, #tpu.memory_space<vmem>>, %arg11: memref<128x8xf32, #tpu.memory_space<vmem>>) attributes {dimension_semantics = [#tpu.dimension_semantics<parallel>], iteration_bounds = array<i64: 2>, scalar_prefetch = 0 : i64, scratch_operands = 0 : i64, tpu.core_type = #tpu.core_type<tc>, window_params = [{transform_indices = @transform_0, window_bounds = array<i64: 128, 1>}, {transform_indices = @transform_1, window_bounds = array<i64: 128, 8>}, {pipeline_mode = #tpu.pipeline_mode<synchronous>, transform_indices = @transform_2, window_bounds = array<i64: 10, 128>}, {pipeline_mode = #tpu.pipeline_mode<synchronous>, transform_indices = @transform_3, window_bounds = array<i64: 1, 128>}, {pipeline_mode = #tpu.pipeline_mode<synchronous>, transform_indices = @transform_4, window_bounds = array<i64: 128, 8>}, {pipeline_mode = #tpu.pipeline_mode<synchronous>, transform_indices = @transform_5, window_bounds = array<i64: 10, 128>}, {pipeline_mode = #tpu.pipeline_mode<synchronous>, transform_indices = @transform_6, window_bounds = array<i64: 1, 128>}, {pipeline_mode = #tpu.pipeline_mode<synchronous>, transform_indices = @transform_7, window_bounds = array<i64: 128, 128>}, {pipeline_mode = #tpu.pipeline_mode<synchronous>, transform_indices = @transform_8, window_bounds = array<i64: 8, 128>}, {pipeline_mode = #tpu.pipeline_mode<synchronous>, transform_indices = @transform_9, window_bounds = array<i64: 1, 8>}, {transform_indices = @transform_10, window_bounds = array<i64: 128, 8>}]} {
    %0 = tpu.iota {dimensions = array<i32: 1>} : vector<128x10xi32>
    %c0 = arith.constant 0 : index
    %c0_0 = arith.constant 0 : index
    %1 = vector.load %arg1[%c0, %c0_0] : memref<128x1xi32, #tpu.memory_space<vmem>>, vector<128x1xi32>
    %2 = vector.broadcast %1 : vector<128x1xi32> to vector<128x10xi32>
    %3 = arith.cmpi eq, %0, %2 : vector<128x10xi32>
    %4 = arith.extui %3 : vector<128x10xi1> to vector<128x10xi32>
    %5 = arith.sitofp %4 : vector<128x10xi32> to vector<128x10xf32>
    %c0_1 = arith.constant 0 : index
    %c0_2 = arith.constant 0 : index
    %6 = vector.load %arg2[%c0_1, %c0_2] : memref<128x8xf32, #tpu.memory_space<vmem>>, vector<128x8xf32>
    %c0_3 = arith.constant 0 : index
    %c0_4 = arith.constant 0 : index
    %7 = vector.load %arg5[%c0_3, %c0_4] : memref<128x8xf32, #tpu.memory_space<vmem>>, vector<128x8xf32>
    %cst = arith.constant dense<0.000000e+00> : vector<128x128xf32>
    %8 = tpu.matmul %6, %7, %cst {dimension_numbers = #tpu.dot_dimension_numbers<[1], [1], [0], [0], [0, 0, 1, 0], [], []>} : vector<128x8xf32>, vector<128x8xf32>, vector<128x128xf32> -> vector<128x128xf32>
    %c0_5 = arith.constant 0 : index
    %c0_6 = arith.constant 0 : index
    %9 = vector.load %arg3[%c0_5, %c0_6] : memref<10x128xf32, #tpu.memory_space<vmem>>, vector<10x128xf32>
    %cst_7 = arith.constant dense<0.000000e+00> : vector<128x128xf32>
    %10 = tpu.matmul %5, %9, %cst_7 {dimension_numbers = #tpu.dot_dimension_numbers<[1], [0], [0], [1], [0, 0, 1, 1], [], []>} : vector<128x10xf32>, vector<10x128xf32>, vector<128x128xf32> -> vector<128x128xf32>
    %c0_8 = arith.constant 0 : index
    %c0_9 = arith.constant 0 : index
    %11 = vector.load %arg4[%c0_8, %c0_9] : memref<1x128xf32, #tpu.memory_space<vmem>>, vector<1x128xf32>
    %12 = vector.broadcast %11 : vector<1x128xf32> to vector<128x128xf32>
    %13 = arith.addf %8, %12 : vector<128x128xf32>
    %14 = arith.mulf %10, %13 : vector<128x128xf32>
    %cst_10 = arith.constant 0.000000e+00 : f32
    %15 = vector.broadcast %cst_10 : f32 to vector<128x128xf32>
    %16 = arith.maximumf %14, %15 : vector<128x128xf32>
    %17 = math.absf %14 : vector<128x128xf32>
    %cst_11 = arith.constant 0.000000e+00 : f32
    %18 = vector.broadcast %cst_11 : f32 to vector<128x128xf32>
    %19 = arith.subf %18, %17 : vector<128x128xf32>
    %20 = math.exp %19 : vector<128x128xf32>
    %21 = math.log1p %20 : vector<128x128xf32>
    %22 = arith.addf %16, %21 : vector<128x128xf32>
    %c0_12 = arith.constant 0 : index
    %c0_13 = arith.constant 0 : index
    %23 = vector.load %arg8[%c0_12, %c0_13] : memref<128x128xf32, #tpu.memory_space<vmem>>, vector<128x128xf32>
    %cst_14 = arith.constant dense<0.000000e+00> : vector<128x128xf32>
    %24 = tpu.matmul %22, %23, %cst_14 {dimension_numbers = #tpu.dot_dimension_numbers<[1], [1], [0], [0], [0, 0, 1, 0], [], []>} : vector<128x128xf32>, vector<128x128xf32>, vector<128x128xf32> -> vector<128x128xf32>
    %c0_15 = arith.constant 0 : index
    %c0_16 = arith.constant 0 : index
    %25 = vector.load %arg6[%c0_15, %c0_16] : memref<10x128xf32, #tpu.memory_space<vmem>>, vector<10x128xf32>
    %cst_17 = arith.constant dense<0.000000e+00> : vector<128x128xf32>
    %26 = tpu.matmul %5, %25, %cst_17 {dimension_numbers = #tpu.dot_dimension_numbers<[1], [0], [0], [1], [0, 0, 1, 1], [], []>} : vector<128x10xf32>, vector<10x128xf32>, vector<128x128xf32> -> vector<128x128xf32>
    %c0_18 = arith.constant 0 : index
    %c0_19 = arith.constant 0 : index
    %27 = vector.load %arg7[%c0_18, %c0_19] : memref<1x128xf32, #tpu.memory_space<vmem>>, vector<1x128xf32>
    %28 = vector.broadcast %27 : vector<1x128xf32> to vector<128x128xf32>
    %29 = arith.addf %24, %28 : vector<128x128xf32>
    %30 = arith.mulf %26, %29 : vector<128x128xf32>
    %cst_20 = arith.constant 0.000000e+00 : f32
    %31 = vector.broadcast %cst_20 : f32 to vector<128x128xf32>
    %32 = arith.maximumf %30, %31 : vector<128x128xf32>
    %33 = math.absf %30 : vector<128x128xf32>
    %cst_21 = arith.constant 0.000000e+00 : f32
    %34 = vector.broadcast %cst_21 : f32 to vector<128x128xf32>
    %35 = arith.subf %34, %33 : vector<128x128xf32>
    %36 = math.exp %35 : vector<128x128xf32>
    %37 = math.log1p %36 : vector<128x128xf32>
    %38 = arith.addf %32, %37 : vector<128x128xf32>
    %c0_22 = arith.constant 0 : index
    %c0_23 = arith.constant 0 : index
    %39 = vector.load %arg9[%c0_22, %c0_23] : memref<8x128xf32, #tpu.memory_space<vmem>>, vector<8x128xf32>
    %cst_24 = arith.constant dense<0.000000e+00> : vector<128x8xf32>
    %40 = tpu.matmul %38, %39, %cst_24 {dimension_numbers = #tpu.dot_dimension_numbers<[1], [1], [0], [0], [0, 0, 1, 0], [], []>} : vector<128x128xf32>, vector<8x128xf32>, vector<128x8xf32> -> vector<128x8xf32>
    %c0_25 = arith.constant 0 : index
    %c0_26 = arith.constant 0 : index
    %41 = vector.load %arg10[%c0_25, %c0_26] : memref<1x8xf32, #tpu.memory_space<vmem>>, vector<1x8xf32>
    %42 = vector.broadcast %41 : vector<1x8xf32> to vector<128x8xf32>
    %43 = arith.addf %40, %42 : vector<128x8xf32>
    %c0_27 = arith.constant 0 : index
    %c0_28 = arith.constant 0 : index
    %44 = vector.load %arg11[%c0_27, %c0_28] : memref<128x8xf32, #tpu.memory_space<vmem>>, vector<128x8xf32>
    tpu.vector_store %arg11[%c0_27, %c0_28], %43 {strides = array<i32>} : memref<128x8xf32, #tpu.memory_space<vmem>>, vector<128x8xf32>,
    return
  }
  func.func @transform_0(%arg0: i32) -> (i32, i32) {
    %c0_i32 = arith.constant 0 : i32
    %c0_i32_0 = arith.constant 0 : i32
    return %arg0, %c0_i32 : i32, i32
  }
  func.func @transform_1(%arg0: i32) -> (i32, i32) {
    %c0_i32 = arith.constant 0 : i32
    %c0_i32_0 = arith.constant 0 : i32
    return %arg0, %c0_i32 : i32, i32
  }
  func.func @transform_2(%arg0: i32) -> (i32, i32) {
    %c0_i32 = arith.constant 0 : i32
    %c0_i32_0 = arith.constant 0 : i32
    %c0_i32_1 = arith.constant 0 : i32
    return %c0_i32, %c0_i32_0 : i32, i32
  }
  func.func @transform_3(%arg0: i32) -> (i32, i32) {
    %c0_i32 = arith.constant 0 : i32
    %c0_i32_0 = arith.constant 0 : i32
    %c0_i32_1 = arith.constant 0 : i32
    return %c0_i32, %c0_i32_0 : i32, i32
  }
  func.func @transform_4(%arg0: i32) -> (i32, i32) {
    %c0_i32 = arith.constant 0 : i32
    %c0_i32_0 = arith.constant 0 : i32
    %c0_i32_1 = arith.constant 0 : i32
    return %c0_i32, %c0_i32_0 : i32, i32
  }
  func.func @transform_5(%arg0: i32) -> (i32, i32) {
    %c0_i32 = arith.constant 0 : i32
    %c0_i32_0 = arith.constant 0 : i32
    %c0_i32_1 = arith.constant 0 : i32
    return %c0_i32, %c0_i32_0 : i32, i32
  }
  func.func @transform_6(%arg0: i32) -> (i32, i32) {
    %c0_i32 = arith.constant 0 : i32
    %c0_i32_0 = arith.constant 0 : i32
    %c0_i32_1 = arith.constant 0 : i32
    return %c0_i32, %c0_i32_0 : i32, i32
  }
  func.func @transform_7(%arg0: i32) -> (i32, i32) {
    %c0_i32 = arith.constant 0 : i32
    %c0_i32_0 = arith.constant 0 : i32
    %c0_i32_1 = arith.constant 0 : i32
    return %c0_i32, %c0_i32_0 : i32, i32
  }
  func.func @transform_8(%arg0: i32) -> (i32, i32) {
    %c0_i32 = arith.constant 0 : i32
    %c0_i32_0 = arith.constant 0 : i32
    %c0_i32_1 = arith.constant 0 : i32
    return %c0_i32, %c0_i32_0 : i32, i32
  }
  func.func @transform_9(%arg0: i32) -> (i32, i32) {
    %c0_i32 = arith.constant 0 : i32
    %c0_i32_0 = arith.constant 0 : i32
    %c0_i32_1 = arith.constant 0 : i32
    return %c0_i32, %c0_i32_0 : i32, i32
  }
  func.func @transform_10(%arg0: i32) -> (i32, i32) {
    %c0_i32 = arith.constant 0 : i32
    %c0_i32_0 = arith.constant 0 : i32
    return %arg0, %c0_i32 : i32, i32
  }
}

</mosaic_0001>

<llo_original>
// kernel: score_model_forward.1
$region0: #{score_model_forward.1}
  #allocation0 [shape = 'u32[]', space=smem, size = 0x4, offset = 0x4, fixed_abs, tag = 'smem constant byte address 0x4 - core index']
  #allocation1 [shape = 'u32[144,128]{1,0:T(1,128)}', space=vmem, size = 0x12000, scoped, tag = 'internal scratch']
  %s0 = inlined_call_operand.vmem [shape: s32[256,1], index: 0, kind: input, shape index: {}]
  %s1 = inlined_call_operand.vmem [shape: f32[256,8], index: 1, kind: input, shape index: {}]
  %s2 = inlined_call_operand.vmem [shape: f32[10,128], index: 2, kind: input, shape index: {}]
  %s3 = inlined_call_operand.vmem [shape: f32[1,128], index: 3, kind: input, shape index: {}]
  %s4 = inlined_call_operand.vmem [shape: f32[128,8], index: 4, kind: input, shape index: {}]
  %s5 = inlined_call_operand.vmem [shape: f32[10,128], index: 5, kind: input, shape index: {}]
  %s6 = inlined_call_operand.vmem [shape: f32[1,128], index: 6, kind: input, shape index: {}]
  %s7 = inlined_call_operand.vmem [shape: f32[128,128], index: 7, kind: input, shape index: {}]
  %s8 = inlined_call_operand.vmem [shape: f32[8,128], index: 8, kind: input, shape index: {}]
  %s9 = inlined_call_operand.vmem [shape: f32[1,8], index: 9, kind: input, shape index: {}]
  %s10 = inlined_call_operand.vmem [shape: f32[256,8], index: 10, kind: output, shape index: {}]
  %s11 = sld [smem:[#allocation0]]
  $region73: #{score_model_forward.1} parent=0
    _
  %s13 = ssub.s32 1, %s11
  %s14 = scalar_select 0, %s13, %s11
  loop: start=0, step=1, limit=4
  $region2: #{score_model_forward.1} parent=0 // loop_pre_header
    _
  $region3: #{score_model_forward.1} parent=0 // loop_header
    %s16 = sphi 0, %s20
    %p17 = scmp.ge.s32.totalorder %s16, 4
    %s26 = sphi 0, %s28
    %s29 = sphi 0, %s26
    %s30 = sphi 0, %s29
    %s46 = sphi 0, %s30
    %s52 = sphi 0, %s54
    %s55 = sphi 0, %s52
    %s56 = sphi 0, %s55
    %s72 = sphi 0, %s56
    %s76 = sphi 0, %s76
    %s78 = sphi 0, %s76
    %s79 = sphi 0, %s78
    %s93 = sphi 0, %s79
    %s97 = sphi 0, %s97
    %s99 = sphi 0, %s97
    %s100 = sphi 0, %s99
    %s114 = sphi 0, %s100
    %s118 = sphi 0, %s118
    %s120 = sphi 0, %s118
    %s121 = sphi 0, %s120
    %s135 = sphi 0, %s121
    %s139 = sphi 0, %s139
    %s141 = sphi 0, %s139
    %s142 = sphi 0, %s141
    %s156 = sphi 0, %s142
    %s160 = sphi 0, %s160
    %s162 = sphi 0, %s160
    %s163 = sphi 0, %s162
    %s177 = sphi 0, %s163
    %s181 = sphi 0, %s181
    %s183 = sphi 0, %s181
    %s184 = sphi 0, %s183
    %s198 = sphi 0, %s184
    %s202 = sphi 0, %s202
    %s204 = sphi 0, %s202
    %s205 = sphi 0, %s204
    %s219 = sphi 0, %s205
    %s223 = sphi 0, %s223
    %s225 = sphi 0, %s223
    %s226 = sphi 0, %s225
    %s240 = sphi 0, %s226
    %s246 = sphi 0, %s248
    %s249 = sphi 0, %s246
    %s250 = sphi 0, %s249
    %s266 = sphi 0, %s250
  $region4: #{score_model_forward.1} parent=0 // loop_header_branch
    %19 = sbr.rel (%p17) target = $region8
  $region5: #{score_model_forward.1} parent=0 // loop_body
    %s21 = ssub.s32 %s16, 1
    %s22 = ssub.s32 %s16, 2
    %s23 = sadd.s32 %s16, 1
    %s24 = ssub.s32 %s16, %s23
    %p25 = scmp.eq.s32.totalorder %s24, 0
    %s27 = sadd.s32 %s26, 1
    %s28 = scalar_select %p25, %s26, %s27
    %p31 = pneg %p25
    %p32 = scmp.eq.s32.totalorder %s16, 1
    %p33 = por %p31, %p32
    %p34 = scmp.ne.s32.totalorder %s26, %s29
    %p35 = scmp.eq.s32.totalorder %s16, 0
    %p36 = por %p34, %p35
    %p37 = scmp.ne.s32.totalorder %s26, %s29
    %p38 = scmp.eq.s32.totalorder %s21, 1
    %p39 = por %p37, %p38
    %p40 = scmp.ne.s32.totalorder %s29, %s30
    %p41 = scmp.eq.s32.totalorder %s21, 0
    %p42 = por %p40, %p41
    %p43 = scmp.ne.s32.totalorder %s29, %s30
    %p44 = scmp.eq.s32.totalorder %s22, 1
    %p45 = por %p43, %p44
    %p47 = scmp.ne.s32.totalorder %s30, %s46
    %p48 = scmp.eq.s32.totalorder %s22, 0
    %p49 = por %p47, %p48
    %s50 = ssub.s32 %s16, %s23
    %p51 = scmp.eq.s32.totalorder %s50, 0
    %s53 = sadd.s32 %s52, 1
    %s54 = scalar_select %p51, %s52, %s53
    %p57 = pneg %p51
    %p58 = scmp.eq.s32.totalorder %s16, 1
    %p59 = por %p57, %p58
    %p60 = scmp.ne.s32.totalorder %s52, %s55
    %p61 = scmp.eq.s32.totalorder %s16, 0
    %p62 = por %p60, %p61
    %p63 = scmp.ne.s32.totalorder %s52, %s55
    %p64 = scmp.eq.s32.totalorder %s21, 1
    %p65 = por %p63, %p64
    %p66 = scmp.ne.s32.totalorder %s55, %s56
    %p67 = scmp.eq.s32.totalorder %s21, 0
    %p68 = por %p66, %p67
    %p69 = scmp.ne.s32.totalorder %s55, %s56
    %p70 = scmp.eq.s32.totalorder %s22, 1
    %p71 = por %p69, %p70
    %p73 = scmp.ne.s32.totalorder %s56, %s72
    %p74 = scmp.eq.s32.totalorder %s22, 0
    %p75 = por %p73, %p74
    %s77 = sadd.s32 %s76, 1
    %p80 = scmp.eq.s32.totalorder %s16, 1
    %p81 = scmp.ne.s32.totalorder %s76, %s78
    %p82 = scmp.eq.s32.totalorder %s16, 0
    %p83 = por %p81, %p82
    %p84 = scmp.ne.s32.totalorder %s76, %s78
    %p85 = scmp.eq.s32.totalorder %s21, 1
    %p86 = por %p84, %p85
    %p87 = scmp.ne.s32.totalorder %s78, %s79
    %p88 = scmp.eq.s32.totalorder %s21, 0
    %p89 = por %p87, %p88
    %p90 = scmp.ne.s32.totalorder %s78, %s79
    %p91 = scmp.eq.s32.totalorder %s22, 1
    %p92 = por %p90, %p91
    %p94 = scmp.ne.s32.totalorder %s79, %s93
    %p95 = scmp.eq.s32.totalorder %s22, 0
    %p96 = por %p94, %p95
    %s98 = sadd.s32 %s97, 1
    %p101 = scmp.eq.s32.totalorder %s16, 1
    %p102 = scmp.ne.s32.totalorder %s97, %s99
    %p103 = scmp.eq.s32.totalorder %s16, 0
    %p104 = por %p102, %p103
    %p105 = scmp.ne.s32.totalorder %s97, %s99
    %p106 = scmp.eq.s32.totalorder %s21, 1
    %p107 = por %p105, %p106
    %p108 = scmp.ne.s32.totalorder %s99, %s100
    %p109 = scmp.eq.s32.totalorder %s21, 0
    %p110 = por %p108, %p109
    %p111 = scmp.ne.s32.totalorder %s99, %s100
    %p112 = scmp.eq.s32.totalorder %s22, 1
    %p113 = por %p111, %p112
    %p115 = scmp.ne.s32.totalorder %s100, %s114
    %p116 = scmp.eq.s32.totalorder %s22, 0
    %p117 = por %p115, %p116
    %s119 = sadd.s32 %s118, 1
    %p122 = scmp.eq.s32.totalorder %s16, 1
    %p123 = scmp.ne.s32.totalorder %s118, %s120
    %p124 = scmp.eq.s32.totalorder %s16, 0
    %p125 = por %p123, %p124
    %p126 = scmp.ne.s32.totalorder %s118, %s120
    %p127 = scmp.eq.s32.totalorder %s21, 1
    %p128 = por %p126, %p127
    %p129 = scmp.ne.s32.totalorder %s120, %s121
    %p130 = scmp.eq.s32.totalorder %s21, 0
    %p131 = por %p129, %p130
    %p132 = scmp.ne.s32.totalorder %s120, %s121
    %p133 = scmp.eq.s32.totalorder %s22, 1
    %p134 = por %p132, %p133
    %p136 = scmp.ne.s32.totalorder %s121, %s135
    %p137 = scmp.eq.s32.totalorder %s22, 0
    %p138 = por %p136, %p137
    %s140 = sadd.s32 %s139, 1
    %p143 = scmp.eq.s32.totalorder %s16, 1
    %p144 = scmp.ne.s32.totalorder %s139, %s141
    %p145 = scmp.eq.s32.totalorder %s16, 0
    %p146 = por %p144, %p145
    %p147 = scmp.ne.s32.totalorder %s139, %s141
    %p148 = scmp.eq.s32.totalorder %s21, 1
    %p149 = por %p147, %p148
    %p150 = scmp.ne.s32.totalorder %s141, %s142
    %p151 = scmp.eq.s32.totalorder %s21, 0
    %p152 = por %p150, %p151
    %p153 = scmp.ne.s32.totalorder %s141, %s142
    %p154 = scmp.eq.s32.totalorder %s22, 1
    %p155 = por %p153, %p154
    %p157 = scmp.ne.s32.totalorder %s142, %s156
    %p158 = scmp.eq.s32.totalorder %s22, 0
    %p159 = por %p157, %p158
    %s161 = sadd.s32 %s160, 1
    %p164 = scmp.eq.s32.totalorder %s16, 1
    %p165 = scmp.ne.s32.totalorder %s160, %s162
    %p166 = scmp.eq.s32.totalorder %s16, 0
    %p167 = por %p165, %p166
    %p168 = scmp.ne.s32.totalorder %s160, %s162
    %p169 = scmp.eq.s32.totalorder %s21, 1
    %p170 = por %p168, %p169
    %p171 = scmp.ne.s32.totalorder %s162, %s163
    %p172 = scmp.eq.s32.totalorder %s21, 0
    %p173 = por %p171, %p172
    %p174 = scmp.ne.s32.totalorder %s162, %s163
    %p175 = scmp.eq.s32.totalorder %s22, 1
    %p176 = por %p174, %p175
    %p178 = scmp.ne.s32.totalorder %s163, %s177
    %p179 = scmp.eq.s32.totalorder %s22, 0
    %p180 = por %p178, %p179
    %s182 = sadd.s32 %s181, 1
    %p185 = scmp.eq.s32.totalorder %s16, 1
    %p186 = scmp.ne.s32.totalorder %s181, %s183
    %p187 = scmp.eq.s32.totalorder %s16, 0
    %p188 = por %p186, %p187
    %p189 = scmp.ne.s32.totalorder %s181, %s183
    %p190 = scmp.eq.s32.totalorder %s21, 1
    %p191 = por %p189, %p190
    %p192 = scmp.ne.s32.totalorder %s183, %s184
    %p193 = scmp.eq.s32.totalorder %s21, 0
    %p194 = por %p192, %p193
    %p195 = scmp.ne.s32.totalorder %s183, %s184
    %p196 = scmp.eq.s32.totalorder %s22, 1
    %p197 = por %p195, %p196
    %p199 = scmp.ne.s32.totalorder %s184, %s198
    %p200 = scmp.eq.s32.totalorder %s22, 0
    %p201 = por %p199, %p200
    %s203 = sadd.s32 %s202, 1
    %p206 = scmp.eq.s32.totalorder %s16, 1
    %p207 = scmp.ne.s32.totalorder %s202, %s204
    %p208 = scmp.eq.s32.totalorder %s16, 0
    %p209 = por %p207, %p208
    %p210 = scmp.ne.s32.totalorder %s202, %s204
    %p211 = scmp.eq.s32.totalorder %s21, 1
    %p212 = por %p210, %p211
    %p213 = scmp.ne.s32.totalorder %s204, %s205
    %p214 = scmp.eq.s32.totalorder %s21, 0
    %p215 = por %p213, %p214
    %p216 = scmp.ne.s32.totalorder %s204, %s205
    %p217 = scmp.eq.s32.totalorder %s22, 1
    %p218 = por %p216, %p217
    %p220 = scmp.ne.s32.totalorder %s205, %s219
    %p221 = scmp.eq.s32.totalorder %s22, 0
    %p222 = por %p220, %p221
    %s224 = sadd.s32 %s223, 1
    %p227 = scmp.eq.s32.totalorder %s16, 1
    %p228 = scmp.ne.s32.totalorder %s223, %s225
    %p229 = scmp.eq.s32.totalorder %s16, 0
    %p230 = por %p228, %p229
    %p231 = scmp.ne.s32.totalorder %s223, %s225
    %p232 = scmp.eq.s32.totalorder %s21, 1
    %p233 = por %p231, %p232
    %p234 = scmp.ne.s32.totalorder %s225, %s226
    %p235 = scmp.eq.s32.totalorder %s21, 0
    %p236 = por %p234, %p235
    %p237 = scmp.ne.s32.totalorder %s225, %s226
    %p238 = scmp.eq.s32.totalorder %s22, 1
    %p239 = por %p237, %p238
    %p241 = scmp.ne.s32.totalorder %s226, %s240
    %p242 = scmp.eq.s32.totalorder %s22, 0
    %p243 = por %p241, %p242
    %s244 = ssub.s32 %s16, %s23
    %p245 = scmp.eq.s32.totalorder %s244, 0
    %s247 = sadd.s32 %s246, 1
    %s248 = scalar_select %p245, %s246, %s247
    %p251 = pneg %p245
    %p252 = scmp.eq.s32.totalorder %s16, 1
    %p253 = por %p251, %p252
    %p254 = scmp.ne.s32.totalorder %s246, %s249
    %p255 = scmp.eq.s32.totalorder %s16, 0
    %p256 = por %p254, %p255
    %p257 = scmp.ne.s32.totalorder %s246, %s249
    %p258 = scmp.eq.s32.totalorder %s21, 1
    %p259 = por %p257, %p258
    %p260 = scmp.ne.s32.totalorder %s249, %s250
    %p261 = scmp.eq.s32.totalorder %s21, 0
    %p262 = por %p260, %p261
    %p263 = scmp.ne.s32.totalorder %s249, %s250
    %p264 = scmp.eq.s32.totalorder %s22, 1
    %p265 = por %p263, %p264
    %p267 = scmp.ne.s32.totalorder %s250, %s266
    %p268 = scmp.eq.s32.totalorder %s22, 0
    %p269 = por %p267, %p268
    %p270 = scmp.le.s32.totalorder 1, %s16
    %p271 = scmp.lt.s32.totalorder %s16, 3
    %p272 = pnand %p270, %p271
    %p273 = pneg %p272
    // Predicated region
    $region9: #{score_model_forward.1} parent=5 // pred_check
      _
    $region10: #{score_model_forward.1} parent=5 // pred_check_branch
      %275 = sbr.rel (%p272) target = $region12
    $region11: #{score_model_forward.1} parent=5 // pred_region
      %s276 = ssub.s32 %s16, 1
      // Predicated region
      $region13: #{score_model_forward.1} parent=11 // pred_check
        %p277 = pneg %p89
      $region14: #{score_model_forward.1} parent=11 // pred_check_branch
        %279 = sbr.rel (%p277) target = $region16
      $region15: #{score_model_forward.1} parent=11 // pred_region
        _
      $region16: #{score_model_forward.1} parent=11 // pred_fallthru
        _
      // Predicated region
      $region17: #{score_model_forward.1} parent=11 // pred_check
        %p280 = pneg %p110
      $region18: #{score_model_forward.1} parent=11 // pred_check_branch
        %282 = sbr.rel (%p280) target = $region20
      $region19: #{score_model_forward.1} parent=11 // pred_region
        _
      $region20: #{score_model_forward.1} parent=11 // pred_fallthru
        _
      // Predicated region
      $region21: #{score_model_forward.1} parent=11 // pred_check
        %p283 = pneg %p131
      $region22: #{score_model_forward.1} parent=11 // pred_check_branch
        %285 = sbr.rel (%p283) target = $region24
      $region23: #{score_model_forward.1} parent=11 // pred_region
        _
      $region24: #{score_model_forward.1} parent=11 // pred_fallthru
        _
      // Predicated region
      $region25: #{score_model_forward.1} parent=11 // pred_check
        %p286 = pneg %p152
      $region26: #{score_model_forward.1} parent=11 // pred_check_branch
        %288 = sbr.rel (%p286) target = $region28
      $region27: #{score_model_forward.1} parent=11 // pred_region
        _
      $region28: #{score_model_forward.1} parent=11 // pred_fallthru
        _
      // Predicated region
      $region29: #{score_model_forward.1} parent=11 // pred_check
        %p289 = pneg %p173
      $region30: #{score_model_forward.1} parent=11 // pred_check_branch
        %291 = sbr.rel (%p289) target = $region32
      $region31: #{score_model_forward.1} parent=11 // pred_region
        _
      $region32: #{score_model_forward.1} parent=11 // pred_fallthru
        _
      // Predicated region
      $region33: #{score_model_forward.1} parent=11 // pred_check
        %p292 = pneg %p194
      $region34: #{score_model_forward.1} parent=11 // pred_check_branch
        %294 = sbr.rel (%p292) target = $region36
      $region35: #{score_model_forward.1} parent=11 // pred_region
        _
      $region36: #{score_model_forward.1} parent=11 // pred_fallthru
        _
      // Predicated region
      $region37: #{score_model_forward.1} parent=11 // pred_check
        %p295 = pneg %p215
      $region38: #{score_model_forward.1} parent=11 // pred_check_branch
        %297 = sbr.rel (%p295) target = $region40
      $region39: #{score_model_forward.1} parent=11 // pred_region
        _
      $region40: #{score_model_forward.1} parent=11 // pred_fallthru
        _
      // Predicated region
      $region41: #{score_model_forward.1} parent=11 // pred_check
        %p298 = pneg %p236
      $region42: #{score_model_forward.1} parent=11 // pred_check_branch
        %300 = sbr.rel (%p298) target = $region44
      $region43: #{score_model_forward.1} parent=11 // pred_region
        _
      $region44: #{score_model_forward.1} parent=11 // pred_fallthru
        _
    $region12: #{score_model_forward.1} parent=5 // pred_fallthru
      _
    %p301 = scmp.lt.s32.totalorder %s16, 2
    // Predicated region
    $region45: #{score_model_forward.1} parent=5 // pred_check
      %p302 = pneg %p301
    $region46: #{score_model_forward.1} parent=5 // pred_check_branch
      %304 = sbr.rel (%p302) target = $region48
    $region47: #{score_model_forward.1} parent=5 // pred_region
      // Predicated region
      $region49: #{score_model_forward.1} parent=47 // pred_check
        %p305 = pneg %p36
      $region50: #{score_model_forward.1} parent=47 // pred_check_branch
        %307 = sbr.rel (%p305) target = $region52
      $region51: #{score_model_forward.1} parent=47 // pred_region
        %s308 = smul.u32 16, %s16
        %p309 = scmp.lt.s32.totalorder %s308, 31
        %s310 = scalar_select %p309, %s308, 31
        %s311 = smul.addr %s310, 8
        %s312 = scalar_lea.vmem %s0, %s311
        %s313 = smul.u32 16, %s16
      $region52: #{score_model_forward.1} parent=47 // pred_fallthru
        _
      // Predicated region
      $region53: #{score_model_forward.1} parent=47 // pred_check
        %p314 = pneg %p62
      $region54: #{score_model_forward.1} parent=47 // pred_check_branch
        %316 = sbr.rel (%p314) target = $region56
      $region55: #{score_model_forward.1} parent=47 // pred_region
        %s317 = smul.u32 16, %s16
        %p318 = scmp.lt.s32.totalorder %s317, 31
        %s319 = scalar_select %p318, %s317, 31
        %s320 = smul.addr %s319, 8
        %s321 = scalar_lea.vmem %s1, %s320
        %s322 = smul.u32 16, %s16
      $region56: #{score_model_forward.1} parent=47 // pred_fallthru
        _
    $region48: #{score_model_forward.1} parent=5 // pred_fallthru
      _
    %p323 = scmp.le.s32.totalorder 1, %s16
    %p324 = scmp.lt.s32.totalorder %s16, 3
    %p325 = pnand %p323, %p324
    %p326 = pneg %p325
    // Predicated region
    $region57: #{score_model_forward.1} parent=5 // pred_check
      _
    $region58: #{score_model_forward.1} parent=5 // pred_check_branch
      %328 = sbr.rel (%p325) target = $region60
    $region59: #{score_model_forward.1} parent=5 // pred_region
      %s329 = ssub.s32 %s16, 1
      %s330 = smul.u32 16, %s21
      %p331 = scmp.lt.s32.totalorder %s330, 31
      %s332 = scalar_select %p331, %s330, 31
      %s333 = smul.addr %s332, 8
      %s334 = scalar_lea.vmem %s0, %s333
      %p335 = pneg %p42
      %p336 = pneg %p39
      %s337 = smul.u32 16, %s21
      %p338 = scmp.lt.s32.totalorder %s337, 31
      %s339 = scalar_select %p338, %s337, 31
      %s340 = smul.addr %s339, 8
      %s341 = scalar_lea.vmem %s1, %s340
      %p342 = pneg %p68
      %p343 = pneg %p65
      %p344 = pneg %p89
      %p345 = pneg %p86
      %p346 = pneg %p110
      %p347 = pneg %p107
      %p348 = pneg %p131
      %p349 = pneg %p128
      %p350 = pneg %p152
      %p351 = pneg %p149
      %p352 = pneg %p173
      %p353 = pneg %p170
      %p354 = pneg %p194
      %p355 = pneg %p191
      %p356 = pneg %p215
      %p357 = pneg %p212
      %p358 = pneg %p236
      %p359 = pneg %p233
      %p360 = pneg %p262
      %p361 = pneg %p259
      %s362 = smul.u32 16, %s21
      %p363 = scmp.lt.s32.totalorder %s362, 31
      %s364 = scalar_select %p363, %s362, 31
      %s365 = smul.addr %s364, 8
      %s366 = scalar_lea.vmem %s10, %s365
      %s367 = smul.u32 16, %s21
      %p368 = scmp.lt.s32.totalorder %s367, 31
      %s369 = scalar_select %p368, %s367, 31
      %s370 = smul.addr %s369, 8
      %s371 = scalar_lea.vmem %s0, %s370
      %s372 = smul.u32 16, %s21
      %s373 = smul.u32 16, %s21
      %p374 = scmp.lt.s32.totalorder %s373, 31
      %s375 = scalar_select %p374, %s373, 31
      %s376 = smul.addr %s375, 8
      %s377 = scalar_lea.vmem %s1, %s376
      %s378 = smul.u32 16, %s21
      %s379 = smul.u32 16, %s21
      %p380 = scmp.lt.s32.totalorder %s379, 31
      %s381 = scalar_select %p380, %s379, 31
      %s382 = smul.addr %s381, 8
      %s383 = scalar_lea.vmem %s10, %s382
      %s384 = smul.u32 16, %s21
      %v385 = vlaneseq
      %v386 = vand.u32 %v385, 127
      %v387 = vld [vmem:[%s371] sm:$0xff]
      %v388 = vld [vmem:[%s371 + $0x8] sm:$0xff]
      %v389 = vld [vmem:[%s371 + $0x10] sm:$0xff]
      %v390 = vld [vmem:[%s371 + $0x18] sm:$0xff]
      %v391 = vld [vmem:[%s371 + $0x20] sm:$0xff]
      %v392 = vld [vmem:[%s371 + $0x28] sm:$0xff]
      %v393 = vld [vmem:[%s371 + $0x30] sm:$0xff]
      %v394 = vld [vmem:[%s371 + $0x38] sm:$0xff]
      %v395 = vld [vmem:[%s371 + $0x40] sm:$0xff]
      %v396 = vld [vmem:[%s371 + $0x48] sm:$0xff]
      %v397 = vld [vmem:[%s371 + $0x50] sm:$0xff]
      %v398 = vld [vmem:[%s371 + $0x58] sm:$0xff]
      %v399 = vld [vmem:[%s371 + $0x60] sm:$0xff]
      %v400 = vld [vmem:[%s371 + $0x68] sm:$0xff]
      %v401 = vld [vmem:[%s371 + $0x70] sm:$0xff]
      %v402 = vld [vmem:[%s371 + $0x78] sm:$0xff]
      %403 = vset.pattern.permute.xlu0 0
      %404 = vperm.xlu0 %403, %v387
      %v405 = vpop.permute.xlu0 %404
      %406 = vset.pattern.permute.xlu0 0
      %407 = vperm.xlu0 %406, %v388
      %v408 = vpop.permute.xlu0 %407
      %409 = vset.pattern.permute.xlu0 0
      %410 = vperm.xlu0 %409, %v389
      %v411 = vpop.permute.xlu0 %410
      %412 = vset.pattern.permute.xlu0 0
      %413 = vperm.xlu0 %412, %v390
      %v414 = vpop.permute.xlu0 %413
      %415 = vset.pattern.permute.xlu0 0
      %416 = vperm.xlu0 %415, %v391
      %v417 = vpop.permute.xlu0 %416
      %418 = vset.pattern.permute.xlu0 0
      %419 = vperm.xlu0 %418, %v392
      %v420 = vpop.permute.xlu0 %419
      %421 = vset.pattern.permute.xlu0 0
      %422 = vperm.xlu0 %421, %v393
      %v423 = vpop.permute.xlu0 %422
      %424 = vset.pattern.permute.xlu0 0
      %425 = vperm.xlu0 %424, %v394
      %v426 = vpop.permute.xlu0 %425
      %427 = vset.pattern.permute.xlu0 0
      %428 = vperm.xlu0 %427, %v395
      %v429 = vpop.permute.xlu0 %428
      %430 = vset.pattern.permute.xlu0 0
      %431 = vperm.xlu0 %430, %v396
      %v432 = vpop.permute.xlu0 %431
      %433 = vset.pattern.permute.xlu0 0
      %434 = vperm.xlu0 %433, %v397
      %v435 = vpop.permute.xlu0 %434
      %436 = vset.pattern.permute.xlu0 0
      %437 = vperm.xlu0 %436, %v398
      %v438 = vpop.permute.xlu0 %437
      %439 = vset.pattern.permute.xlu0 0
      %440 = vperm.xlu0 %439, %v399
      %v441 = vpop.permute.xlu0 %440
      %442 = vset.pattern.permute.xlu0 0
      %443 = vperm.xlu0 %442, %v400
      %v444 = vpop.permute.xlu0 %443
      %445 = vset.pattern.permute.xlu0 0
      %446 = vperm.xlu0 %445, %v401
      %v447 = vpop.permute.xlu0 %446
      %448 = vset.pattern.permute.xlu0 0
      %449 = vperm.xlu0 %448, %v402
      %v450 = vpop.permute.xlu0 %449
      %vm451 = vcmp.eq.s32.totalorder %v386, %v405
      %vm452 = vcmp.eq.s32.totalorder %v386, %v408
      %vm453 = vcmp.eq.s32.totalorder %v386, %v411
      %vm454 = vcmp.eq.s32.totalorder %v386, %v414
      %vm455 = vcmp.eq.s32.totalorder %v386, %v417
      %vm456 = vcmp.eq.s32.totalorder %v386, %v420
      %vm457 = vcmp.eq.s32.totalorder %v386, %v423
      %vm458 = vcmp.eq.s32.totalorder %v386, %v426
      %vm459 = vcmp.eq.s32.totalorder %v386, %v429
      %vm460 = vcmp.eq.s32.totalorder %v386, %v432
      %vm461 = vcmp.eq.s32.totalorder %v386, %v435
      %vm462 = vcmp.eq.s32.totalorder %v386, %v438
      %vm463 = vcmp.eq.s32.totalorder %v386, %v441
      %vm464 = vcmp.eq.s32.totalorder %v386, %v444
      %vm465 = vcmp.eq.s32.totalorder %v386, %v447
      %vm466 = vcmp.eq.s32.totalorder %v386, %v450
      %v467 = vsel %vm451, 1, 0
      %v468 = vsel %vm452, 1, 0
      %v469 = vsel %vm453, 1, 0
      %v470 = vsel %vm454, 1, 0
      %v471 = vsel %vm455, 1, 0
      %v472 = vsel %vm456, 1, 0
      %v473 = vsel %vm457, 1, 0
      %v474 = vsel %vm458, 1, 0
      %v475 = vsel %vm459, 1, 0
      %v476 = vsel %vm460, 1, 0
      %v477 = vsel %vm461, 1, 0
      %v478 = vsel %vm462, 1, 0
      %v479 = vsel %vm463, 1, 0
      %v480 = vsel %vm464, 1, 0
      %v481 = vsel %vm465, 1, 0
      %v482 = vsel %vm466, 1, 0
      %v483 = vcvt.s32.f32 %v467
      %v484 = vcvt.s32.f32 %v468
      %v485 = vcvt.s32.f32 %v469
      %v486 = vcvt.s32.f32 %v470
      %v487 = vcvt.s32.f32 %v471
      %v488 = vcvt.s32.f32 %v472
      %v489 = vcvt.s32.f32 %v473
      %v490 = vcvt.s32.f32 %v474
      %v491 = vcvt.s32.f32 %v475
      %v492 = vcvt.s32.f32 %v476
      %v493 = vcvt.s32.f32 %v477
      %v494 = vcvt.s32.f32 %v478
      %v495 = vcvt.s32.f32 %v479
      %v496 = vcvt.s32.f32 %v480
      %v497 = vcvt.s32.f32 %v481
      %v498 = vcvt.s32.f32 %v482
      %v499 = vld [vmem:[%s377] sm:$0xff]
      %v500 = vld [vmem:[%s377 + $0x8] sm:$0xff]
      %v501 = vld [vmem:[%s377 + $0x10] sm:$0xff]
      %v502 = vld [vmem:[%s377 + $0x18] sm:$0xff]
      %v503 = vld [vmem:[%s377 + $0x20] sm:$0xff]
      %v504 = vld [vmem:[%s377 + $0x28] sm:$0xff]
      %v505 = vld [vmem:[%s377 + $0x30] sm:$0xff]
      %v506 = vld [vmem:[%s377 + $0x38] sm:$0xff]
      %v507 = vld [vmem:[%s377 + $0x40] sm:$0xff]
      %v508 = vld [vmem:[%s377 + $0x48] sm:$0xff]
      %v509 = vld [vmem:[%s377 + $0x50] sm:$0xff]
      %v510 = vld [vmem:[%s377 + $0x58] sm:$0xff]
      %v511 = vld [vmem:[%s377 + $0x60] sm:$0xff]
      %v512 = vld [vmem:[%s377 + $0x68] sm:$0xff]
      %v513 = vld [vmem:[%s377 + $0x70] sm:$0xff]
      %v514 = vld [vmem:[%s377 + $0x78] sm:$0xff]
      %v515 = vld [vmem:[%s4] sm:$0xff]
      %v516 = vld [vmem:[%s4 + $0x8] sm:$0xff]
      %v517 = vld [vmem:[%s4 + $0x10] sm:$0xff]
      %v518 = vld [vmem:[%s4 + $0x18] sm:$0xff]
      %v519 = vld [vmem:[%s4 + $0x20] sm:$0xff]
      %v520 = vld [vmem:[%s4 + $0x28] sm:$0xff]
      %v521 = vld [vmem:[%s4 + $0x30] sm:$0xff]
      %v522 = vld [vmem:[%s4 + $0x38] sm:$0xff]
      %v523 = vld [vmem:[%s4 + $0x40] sm:$0xff]
      %v524 = vld [vmem:[%s4 + $0x48] sm:$0xff]
      %v525 = vld [vmem:[%s4 + $0x50] sm:$0xff]
      %v526 = vld [vmem:[%s4 + $0x58] sm:$0xff]
      %v527 = vld [vmem:[%s4 + $0x60] sm:$0xff]
      %v528 = vld [vmem:[%s4 + $0x68] sm:$0xff]
      %v529 = vld [vmem:[%s4 + $0x70] sm:$0xff]
      %v530 = vld [vmem:[%s4 + $0x78] sm:$0xff]
      %v531 = vld [vmem:[%s2] sm:$0xff]
      %v532 = vld [vmem:[%s2 + $0x8] sm:$0x3]
      %vm533 = vcmask 80896
      %v535 = vsel %vm533, %v483, 0
      %v538 = vsel %vm533, %v484, 0
      %v541 = vsel %vm533, %v485, 0
      %v544 = vsel %vm533, %v486, 0
      %v547 = vsel %vm533, %v487, 0
      %v550 = vsel %vm533, %v488, 0
      %v553 = vsel %vm533, %v489, 0
      %v556 = vsel %vm533, %v490, 0
      %v559 = vsel %vm533, %v491, 0
      %v562 = vsel %vm533, %v492, 0
      %v565 = vsel %vm533, %v493, 0
      %v568 = vsel %vm533, %v494, 0
      %v571 = vsel %vm533, %v495, 0
      %v574 = vsel %vm533, %v496, 0
      %v577 = vsel %vm533, %v497, 0
      %v580 = vsel %vm533, %v498, 0
      %vm582 = vcmask 1041408
      %v584 = vsel %vm582, %v532, 0
      %586 = vmatprep.subr.mxu0 0.0
      %587 = vmatpush1.msra.mxu0 0.0
      %588 = vmatprep.subr.mxu0 0.0
      %589 = vmatpush1.msra.mxu0 0.0
      %590 = vmatprep.subr.mxu0 0.0
      %591 = vmatpush1.msra.mxu0 0.0
      %592 = vmatprep.subr.mxu0 0.0
      %593 = vmatpush1.msra.mxu0 0.0
      %594 = vmatprep.subr.mxu0 0.0
      %595 = vmatpush1.msra.mxu0 0.0
      %596 = vmatprep.subr.mxu0 0.0
      %597 = vmatpush1.msra.mxu0 0.0
      %598 = vmatprep.subr.mxu0 0.0
      %599 = vmatpush1.msra.mxu0 0.0
      %600 = vmatprep.subr.mxu0 0.0
      %601 = vmatpush1.msra.mxu0 0.0
      %602 = vmatprep.subr.mxu0 0.0
      %603 = vmatpush1.msra.mxu0 0.0
      %604 = vmatprep.subr.mxu0 0.0
      %605 = vmatpush1.msra.mxu0 0.0
      %606 = vmatprep.subr.mxu0 0.0
      %607 = vmatpush1.msra.mxu0 0.0
      %608 = vmatprep.subr.mxu0 0.0
      %609 = vmatpush1.msra.mxu0 0.0
      %610 = vmatprep.subr.mxu0 0.0
      %611 = vmatpush1.msra.mxu0 0.0
      %612 = vmatprep.subr.mxu0 0.0
      %613 = vmatpush1.msra.mxu0 0.0
      %614 = vmatprep.subr.mxu0 0.0
      %615 = vmatpush1.msra.mxu0 %v584
      %616 = vmatprep.subr.mxu0 0.0
      %617 = vmatpush1.msra.mxu0 %v531
      %618 = vmatprep.subr.mxu0 0.0
      %619 = vmatpush2.msra.mxu0 0.0
      %620 = vmatprep.subr.mxu0 0.0
      %621 = vmatpush2.msra.mxu0 0.0
      %622 = vmatprep.subr.mxu0 0.0
      %623 = vmatpush2.msra.mxu0 0.0
      %624 = vmatprep.subr.mxu0 0.0
      %625 = vmatpush2.msra.mxu0 0.0
      %626 = vmatprep.subr.mxu0 0.0
      %627 = vmatpush2.msra.mxu0 0.0
      %628 = vmatprep.subr.mxu0 0.0
      %629 = vmatpush2.msra.mxu0 0.0
      %630 = vmatprep.subr.mxu0 0.0
      %631 = vmatpush2.msra.mxu0 0.0
      %632 = vmatprep.subr.mxu0 0.0
      %633 = vmatpush2.msra.mxu0 0.0
      %634 = vmatprep.subr.mxu0 0.0
      %635 = vmatpush2.msra.mxu0 0.0
      %636 = vmatprep.subr.mxu0 0.0
      %637 = vmatpush2.msra.mxu0 0.0
      %638 = vmatprep.subr.mxu0 0.0
      %639 = vmatpush2.msra.mxu0 0.0
      %640 = vmatprep.subr.mxu0 0.0
      %641 = vmatpush2.msra.mxu0 0.0
      %642 = vmatprep.subr.mxu0 0.0
      %643 = vmatpush2.msra.mxu0 0.0
      %644 = vmatprep.subr.mxu0 0.0
      %645 = vmatpush2.msra.mxu0 0.0
      %646 = vmatprep.subr.mxu0 0.0
      %647 = vmatpush2.msra.mxu0 0.0
      %648 = vmatprep.subr.mxu0 0.0
      %649 = vmatpush2.msra.mxu0 0.0
      %650 = vmatprep.mubr.f32.mxu0 0.0
      %651 = vmatmul.mubr.f32.gmra.mxu0 %v535
      %v652 = vpop.f32.mrf.mxu0
      %v653 = vadd.f32 0.0, %v652
      %v654 = vpop.f32.mrf.mxu0
      %655 = vmatprep.mubr.f32.mxu0 0.0
      %656 = vmatmul.mubr.f32.gmra.mxu0 %v538
      %v657 = vpop.f32.mrf.mxu0
      %v658 = vadd.f32 0.0, %v657
      %v659 = vpop.f32.mrf.mxu0
      %660 = vmatprep.mubr.f32.mxu0 0.0
      %661 = vmatmul.mubr.f32.gmra.mxu0 %v541
      %v662 = vpop.f32.mrf.mxu0
      %v663 = vadd.f32 0.0, %v662
      %v664 = vpop.f32.mrf.mxu0
      %665 = vmatprep.mubr.f32.mxu0 0.0
      %666 = vmatmul.mubr.f32.gmra.mxu0 %v544
      %v667 = vpop.f32.mrf.mxu0
      %v668 = vadd.f32 0.0, %v667
      %v669 = vpop.f32.mrf.mxu0
      %670 = vmatprep.mubr.f32.mxu0 0.0
      %671 = vmatmul.mubr.f32.gmra.mxu0 %v547
      %v672 = vpop.f32.mrf.mxu0
      %v673 = vadd.f32 0.0, %v672
      %v674 = vpop.f32.mrf.mxu0
      %675 = vmatprep.mubr.f32.mxu0 0.0
      %676 = vmatmul.mubr.f32.gmra.mxu0 %v550
      %v677 = vpop.f32.mrf.mxu0
      %v678 = vadd.f32 0.0, %v677
      %v679 = vpop.f32.mrf.mxu0
      %680 = vmatprep.mubr.f32.mxu0 0.0
      %681 = vmatmul.mubr.f32.gmra.mxu0 %v553
      %v682 = vpop.f32.mrf.mxu0
      %v683 = vadd.f32 0.0, %v682
      %v684 = vpop.f32.mrf.mxu0
      %685 = vmatprep.mubr.f32.mxu0 0.0
      %686 = vmatmul.mubr.f32.gmra.mxu0 %v556
      %v687 = vpop.f32.mrf.mxu0
      %v688 = vadd.f32 0.0, %v687
      %v689 = vpop.f32.mrf.mxu0
      %690 = vmatprep.mubr.f32.mxu0 0.0
      %691 = vmatmul.mubr.f32.gmra.mxu0 %v559
      %v692 = vpop.f32.mrf.mxu0
      %v693 = vadd.f32 0.0, %v692
      %v694 = vpop.f32.mrf.mxu0
      %695 = vmatprep.mubr.f32.mxu0 0.0
      %696 = vmatmul.mubr.f32.gmra.mxu0 %v562
      %v697 = vpop.f32.mrf.mxu0
      %v698 = vadd.f32 0.0, %v697
      %v699 = vpop.f32.mrf.mxu0
      %700 = vmatprep.mubr.f32.mxu0 0.0
      %701 = vmatmul.mubr.f32.gmra.mxu0 %v565
      %v702 = vpop.f32.mrf.mxu0
      %v703 = vadd.f32 0.0, %v702
      %v704 = vpop.f32.mrf.mxu0
      %705 = vmatprep.mubr.f32.mxu0 0.0
      %706 = vmatmul.mubr.f32.gmra.mxu0 %v568
      %v707 = vpop.f32.mrf.mxu0
      %v708 = vadd.f32 0.0, %v707
      %v709 = vpop.f32.mrf.mxu0
      %710 = vmatprep.mubr.f32.mxu0 0.0
      %711 = vmatmul.mubr.f32.gmra.mxu0 %v571
      %v712 = vpop.f32.mrf.mxu0
      %v713 = vadd.f32 0.0, %v712
      %v714 = vpop.f32.mrf.mxu0
      %715 = vmatprep.mubr.f32.mxu0 0.0
      %716 = vmatmul.mubr.f32.gmra.mxu0 %v574
      %v717 = vpop.f32.mrf.mxu0
      %v718 = vadd.f32 0.0, %v717
      %v719 = vpop.f32.mrf.mxu0
      %720 = vmatprep.mubr.f32.mxu0 0.0
      %721 = vmatmul.mubr.f32.gmra.mxu0 %v577
      %v722 = vpop.f32.mrf.mxu0
      %v723 = vadd.f32 0.0, %v722
      %v724 = vpop.f32.mrf.mxu0
      %725 = vmatprep.mubr.f32.mxu0 0.0
      %726 = vmatmul.mubr.f32.gmra.mxu0 %v580
      %v727 = vpop.f32.mrf.mxu0
      %v728 = vadd.f32 0.0, %v727
      %v729 = vpop.f32.mrf.mxu0
      %730 = vdwg.mxu0
      %v731 = vld [vmem:[%s3] sm:$0x1]
      %v733 = vlaneseq
      %v734 = vshrl.u32 %v733, 7
      %v735 = vsub.s32 0, %v734
      %v736 = vrot.slane %v731, %v735
      %vm738 = vcmask 64512
      %v740 = vsel %vm738, %v499, 0
      %v743 = vsel %vm738, %v500, 0
      %v746 = vsel %vm738, %v501, 0
      %v749 = vsel %vm738, %v502, 0
      %v752 = vsel %vm738, %v503, 0
      %v755 = vsel %vm738, %v504, 0
      %v758 = vsel %vm738, %v505, 0
      %v761 = vsel %vm738, %v506, 0
      %v764 = vsel %vm738, %v507, 0
      %v767 = vsel %vm738, %v508, 0
      %v770 = vsel %vm738, %v509, 0
      %v773 = vsel %vm738, %v510, 0
      %v776 = vsel %vm738, %v511, 0
      %v779 = vsel %vm738, %v512, 0
      %v782 = vsel %vm738, %v513, 0
      %v785 = vsel %vm738, %v514, 0
      %v788 = vsel %vm738, %v515, 0
      %v791 = vsel %vm738, %v516, 0
      %v794 = vsel %vm738, %v517, 0
      %v797 = vsel %vm738, %v518, 0
      %v800 = vsel %vm738, %v519, 0
      %v803 = vsel %vm738, %v520, 0
      %v806 = vsel %vm738, %v521, 0
      %v809 = vsel %vm738, %v522, 0
      %v812 = vsel %vm738, %v523, 0
      %v815 = vsel %vm738, %v524, 0
      %v818 = vsel %vm738, %v525, 0
      %v821 = vsel %vm738, %v526, 0
      %v824 = vsel %vm738, %v527, 0
      %v827 = vsel %vm738, %v528, 0
      %v830 = vsel %vm738, %v529, 0
      %v833 = vsel %vm738, %v530, 0
      %835 = vmatprep.subr.mxu0 0.0
      %836 = vmatpush1.xpose.msra.mxu0 %v833
      %837 = vmatprep.subr.mxu0 0.0
      %838 = vmatpush1.xpose.msra.mxu0 %v830
      %839 = vmatprep.subr.mxu0 0.0
      %840 = vmatpush1.xpose.msra.mxu0 %v827
      %841 = vmatprep.subr.mxu0 0.0
      %842 = vmatpush1.xpose.msra.mxu0 %v824
      %843 = vmatprep.subr.mxu0 0.0
      %844 = vmatpush1.xpose.msra.mxu0 %v821
      %845 = vmatprep.subr.mxu0 0.0
      %846 = vmatpush1.xpose.msra.mxu0 %v818
      %847 = vmatprep.subr.mxu0 0.0
      %848 = vmatpush1.xpose.msra.mxu0 %v815
      %849 = vmatprep.subr.mxu0 0.0
      %850 = vmatpush1.xpose.msra.mxu0 %v812
      %851 = vmatprep.subr.mxu0 0.0
      %852 = vmatpush1.xpose.msra.mxu0 %v809
      %853 = vmatprep.subr.mxu0 0.0
      %854 = vmatpush1.xpose.msra.mxu0 %v806
      %855 = vmatprep.subr.mxu0 0.0
      %856 = vmatpush1.xpose.msra.mxu0 %v803
      %857 = vmatprep.subr.mxu0 0.0
      %858 = vmatpush1.xpose.msra.mxu0 %v800
      %859 = vmatprep.subr.mxu0 0.0
      %860 = vmatpush1.xpose.msra.mxu0 %v797
      %861 = vmatprep.subr.mxu0 0.0
      %862 = vmatpush1.xpose.msra.mxu0 %v794
      %863 = vmatprep.subr.mxu0 0.0
      %864 = vmatpush1.xpose.msra.mxu0 %v791
      %865 = vmatprep.subr.mxu0 0.0
      %866 = vmatpush1.xpose.msra.mxu0 %v788
      %867 = vmatprep.subr.mxu0 0.0
      %868 = vmatpush2.xpose.msra.mxu0 0.0
      %869 = vmatprep.subr.mxu0 0.0
      %870 = vmatpush2.xpose.msra.mxu0 0.0
      %871 = vmatprep.subr.mxu0 0.0
      %872 = vmatpush2.xpose.msra.mxu0 0.0
      %873 = vmatprep.subr.mxu0 0.0
      %874 = vmatpush2.xpose.msra.mxu0 0.0
      %875 = vmatprep.subr.mxu0 0.0
      %876 = vmatpush2.xpose.msra.mxu0 0.0
      %877 = vmatprep.subr.mxu0 0.0
      %878 = vmatpush2.xpose.msra.mxu0 0.0
      %879 = vmatprep.subr.mxu0 0.0
      %880 = vmatpush2.xpose.msra.mxu0 0.0
      %881 = vmatprep.subr.mxu0 0.0
      %882 = vmatpush2.xpose.msra.mxu0 0.0
      %883 = vmatprep.subr.mxu0 0.0
      %884 = vmatpush2.xpose.msra.mxu0 0.0
      %885 = vmatprep.subr.mxu0 0.0
      %886 = vmatpush2.xpose.msra.mxu0 0.0
      %887 = vmatprep.subr.mxu0 0.0
      %888 = vmatpush2.xpose.msra.mxu0 0.0
      %889 = vmatprep.subr.mxu0 0.0
      %890 = vmatpush2.xpose.msra.mxu0 0.0
      %891 = vmatprep.subr.mxu0 0.0
      %892 = vmatpush2.xpose.msra.mxu0 0.0
      %893 = vmatprep.subr.mxu0 0.0
      %894 = vmatpush2.xpose.msra.mxu0 0.0
      %895 = vmatprep.subr.mxu0 0.0
      %896 = vmatpush2.xpose.msra.mxu0 0.0
      %897 = vmatprep.subr.mxu0 0.0
      %898 = vmatpush2.xpose.msra.mxu0 0.0
      %899 = vmatprep.mubr.f32.mxu0 0.0
      %900 = vmatmul.mubr.f32.gmra.mxu0 %v740
      %v901 = vpop.f32.mrf.mxu0
      %v902 = vadd.f32 %v736, %v901
      %v903 = vpop.f32.mrf.mxu0
      %904 = vmatprep.mubr.f32.mxu0 0.0
      %905 = vmatmul.mubr.f32.gmra.mxu0 %v743
      %v906 = vpop.f32.mrf.mxu0
      %v907 = vadd.f32 %v736, %v906
      %v908 = vpop.f32.mrf.mxu0
      %909 = vmatprep.mubr.f32.mxu0 0.0
      %910 = vmatmul.mubr.f32.gmra.mxu0 %v746
      %v911 = vpop.f32.mrf.mxu0
      %v912 = vadd.f32 %v736, %v911
      %v913 = vpop.f32.mrf.mxu0
      %914 = vmatprep.mubr.f32.mxu0 0.0
      %915 = vmatmul.mubr.f32.gmra.mxu0 %v749
      %v916 = vpop.f32.mrf.mxu0
      %v917 = vadd.f32 %v736, %v916
      %v918 = vpop.f32.mrf.mxu0
      %919 = vmatprep.mubr.f32.mxu0 0.0
      %920 = vmatmul.mubr.f32.gmra.mxu0 %v752
      %v921 = vpop.f32.mrf.mxu0
      %v922 = vadd.f32 %v736, %v921
      %v923 = vpop.f32.mrf.mxu0
      %924 = vmatprep.mubr.f32.mxu0 0.0
      %925 = vmatmul.mubr.f32.gmra.mxu0 %v755
      %v926 = vpop.f32.mrf.mxu0
      %v927 = vadd.f32 %v736, %v926
      %v928 = vpop.f32.mrf.mxu0
      %929 = vmatprep.mubr.f32.mxu0 0.0
      %930 = vmatmul.mubr.f32.gmra.mxu0 %v758
      %v931 = vpop.f32.mrf.mxu0
      %v932 = vadd.f32 %v736, %v931
      %v933 = vpop.f32.mrf.mxu0
      %934 = vmatprep.mubr.f32.mxu0 0.0
      %935 = vmatmul.mubr.f32.gmra.mxu0 %v761
      %v936 = vpop.f32.mrf.mxu0
      %v937 = vadd.f32 %v736, %v936
      %v938 = vpop.f32.mrf.mxu0
      %939 = vmatprep.mubr.f32.mxu0 0.0
      %940 = vmatmul.mubr.f32.gmra.mxu0 %v764
      %v941 = vpop.f32.mrf.mxu0
      %v942 = vadd.f32 %v736, %v941
      %v943 = vpop.f32.mrf.mxu0
      %944 = vmatprep.mubr.f32.mxu0 0.0
      %945 = vmatmul.mubr.f32.gmra.mxu0 %v767
      %v946 = vpop.f32.mrf.mxu0
      %v947 = vadd.f32 %v736, %v946
      %v948 = vpop.f32.mrf.mxu0
      %949 = vmatprep.mubr.f32.mxu0 0.0
      %950 = vmatmul.mubr.f32.gmra.mxu0 %v770
      %v951 = vpop.f32.mrf.mxu0
      %v952 = vadd.f32 %v736, %v951
      %v953 = vpop.f32.mrf.mxu0
      %954 = vmatprep.mubr.f32.mxu0 0.0
      %955 = vmatmul.mubr.f32.gmra.mxu0 %v773
      %v956 = vpop.f32.mrf.mxu0
      %v957 = vadd.f32 %v736, %v956
      %v958 = vpop.f32.mrf.mxu0
      %959 = vmatprep.mubr.f32.mxu0 0.0
      %960 = vmatmul.mubr.f32.gmra.mxu0 %v776
      %v961 = vpop.f32.mrf.mxu0
      %v962 = vadd.f32 %v736, %v961
      %v963 = vpop.f32.mrf.mxu0
      %964 = vmatprep.mubr.f32.mxu0 0.0
      %965 = vmatmul.mubr.f32.gmra.mxu0 %v779
      %v966 = vpop.f32.mrf.mxu0
      %v967 = vadd.f32 %v736, %v966
      %v968 = vpop.f32.mrf.mxu0
      %969 = vmatprep.mubr.f32.mxu0 0.0
      %970 = vmatmul.mubr.f32.gmra.mxu0 %v782
      %v971 = vpop.f32.mrf.mxu0
      %v972 = vadd.f32 %v736, %v971
      %v973 = vpop.f32.mrf.mxu0
      %974 = vmatprep.mubr.f32.mxu0 0.0
      %975 = vmatmul.mubr.f32.gmra.mxu0 %v785
      %v976 = vpop.f32.mrf.mxu0
      %v977 = vadd.f32 %v736, %v976
      %v978 = vpop.f32.mrf.mxu0
      %979 = vdwg.mxu0
      %v980 = vmul.f32 %v653, %v902
      %v981 = vmul.f32 %v658, %v907
      %v982 = vmul.f32 %v663, %v912
      %v983 = vmul.f32 %v668, %v917
      %v984 = vmul.f32 %v673, %v922
      %v985 = vmul.f32 %v678, %v927
      %v986 = vmul.f32 %v683, %v932
      %v987 = vmul.f32 %v688, %v937
      %v988 = vmul.f32 %v693, %v942
      %v989 = vmul.f32 %v698, %v947
      %v990 = vmul.f32 %v703, %v952
      %v991 = vmul.f32 %v708, %v957
      %v992 = vmul.f32 %v713, %v962
      %v993 = vmul.f32 %v718, %v967
      %v994 = vmul.f32 %v723, %v972
      %v995 = vmul.f32 %v728, %v977
      %v996 = vmax.f32 %v980, 0.0
      %v997 = vmax.f32 %v981, 0.0
      %v998 = vmax.f32 %v982, 0.0
      %v999 = vmax.f32 %v983, 0.0
      %v1000 = vmax.f32 %v984, 0.0
      %v1001 = vmax.f32 %v985, 0.0
      %v1002 = vmax.f32 %v986, 0.0
      %v1003 = vmax.f32 %v987, 0.0
      %v1004 = vmax.f32 %v988, 0.0
      %v1005 = vmax.f32 %v989, 0.0
      %v1006 = vmax.f32 %v990, 0.0
      %v1007 = vmax.f32 %v991, 0.0
      %v1008 = vmax.f32 %v992, 0.0
      %v1009 = vmax.f32 %v993, 0.0
      %v1010 = vmax.f32 %v994, 0.0
      %v1011 = vmax.f32 %v995, 0.0
      %v1012 = vand.u32 2147483647, %v980
      %v1013 = vand.u32 2147483647, %v981
      %v1014 = vand.u32 2147483647, %v982
      %v1015 = vand.u32 2147483647, %v983
      %v1016 = vand.u32 2147483647, %v984
      %v1017 = vand.u32 2147483647, %v985
      %v1018 = vand.u32 2147483647, %v986
      %v1019 = vand.u32 2147483647, %v987
      %v1020 = vand.u32 2147483647, %v988
      %v1021 = vand.u32 2147483647, %v989
      %v1022 = vand.u32 2147483647, %v990
      %v1023 = vand.u32 2147483647, %v991
      %v1024 = vand.u32 2147483647, %v992
      %v1025 = vand.u32 2147483647, %v993
      %v1026 = vand.u32 2147483647, %v994
      %v1027 = vand.u32 2147483647, %v995
      %v1028 = vsub.f32 0.0, %v1012
      %v1029 = vsub.f32 0.0, %v1013
      %v1030 = vsub.f32 0.0, %v1014
      %v1031 = vsub.f32 0.0, %v1015
      %v1032 = vsub.f32 0.0, %v1016
      %v1033 = vsub.f32 0.0, %v1017
      %v1034 = vsub.f32 0.0, %v1018
      %v1035 = vsub.f32 0.0, %v1019
      %v1036 = vsub.f32 0.0, %v1020
      %v1037 = vsub.f32 0.0, %v1021
      %v1038 = vsub.f32 0.0, %v1022
      %v1039 = vsub.f32 0.0, %v1023
      %v1040 = vsub.f32 0.0, %v1024
      %v1041 = vsub.f32 0.0, %v1025
      %v1042 = vsub.f32 0.0, %v1026
      %v1043 = vsub.f32 0.0, %v1027
      %v1044 = vmul.f32 %v1028, 1.442695
      %v1045 = vpow.pop %v1044
      %v1046 = vmul.f32 %v1029, 1.442695
      %v1047 = vpow.pop %v1046
      %v1048 = vmul.f32 %v1030, 1.442695
      %v1049 = vpow.pop %v1048
      %v1050 = vmul.f32 %v1031, 1.442695
      %v1051 = vpow.pop %v1050
      %v1052 = vmul.f32 %v1032, 1.442695
      %v1053 = vpow.pop %v1052
      %v1054 = vmul.f32 %v1033, 1.442695
      %v1055 = vpow.pop %v1054
      %v1056 = vmul.f32 %v1034, 1.442695
      %v1057 = vpow.pop %v1056
      %v1058 = vmul.f32 %v1035, 1.442695
      %v1059 = vpow.pop %v1058
      %v1060 = vmul.f32 %v1036, 1.442695
      %v1061 = vpow.pop %v1060
      %v1062 = vmul.f32 %v1037, 1.442695
      %v1063 = vpow.pop %v1062
      %v1064 = vmul.f32 %v1038, 1.442695
      %v1065 = vpow.pop %v1064
      %v1066 = vmul.f32 %v1039, 1.442695
      %v1067 = vpow.pop %v1066
      %v1068 = vmul.f32 %v1040, 1.442695
      %v1069 = vpow.pop %v1068
      %v1070 = vmul.f32 %v1041, 1.442695
      %v1071 = vpow.pop %v1070
      %v1072 = vmul.f32 %v1042, 1.442695
      %v1073 = vpow.pop %v1072
      %v1074 = vmul.f32 %v1043, 1.442695
      %v1075 = vpow.pop %v1074
      %v1076 = vadd.f32 %v1045, 1.0
      %v1077 = vlog2.pop %v1076
      %v1078 = vmul.f32 %v1077, 0.6931472
      %v1079 = vmul.f32 -0.5, %v1045
      %v1080 = vadd.f32 %v1079, 1.0
      %v1081 = vmul.f32 %v1080, %v1045
      %v1082 = vand.u32 2147483647, %v1045
      %vm1083 = vcmp.lt.f32.partialorder %v1082, 0.0004427343
      %v1084 = vsel %vm1083, %v1081, %v1078
      %v1085 = vadd.f32 %v1047, 1.0
      %v1086 = vlog2.pop %v1085
      %v1087 = vmul.f32 %v1086, 0.6931472
      %v1088 = vmul.f32 -0.5, %v1047
      %v1089 = vadd.f32 %v1088, 1.0
      %v1090 = vmul.f32 %v1089, %v1047
      %v1091 = vand.u32 2147483647, %v1047
      %vm1092 = vcmp.lt.f32.partialorder %v1091, 0.0004427343
      %v1093 = vsel %vm1092, %v1090, %v1087
      %v1094 = vadd.f32 %v1049, 1.0
      %v1095 = vlog2.pop %v1094
      %v1096 = vmul.f32 %v1095, 0.6931472
      %v1097 = vmul.f32 -0.5, %v1049
      %v1098 = vadd.f32 %v1097, 1.0
      %v1099 = vmul.f32 %v1098, %v1049
      %v1100 = vand.u32 2147483647, %v1049
      %vm1101 = vcmp.lt.f32.partialorder %v1100, 0.0004427343
      %v1102 = vsel %vm1101, %v1099, %v1096
      %v1103 = vadd.f32 %v1051, 1.0
      %v1104 = vlog2.pop %v1103
      %v1105 = vmul.f32 %v1104, 0.6931472
      %v1106 = vmul.f32 -0.5, %v1051
      %v1107 = vadd.f32 %v1106, 1.0
      %v1108 = vmul.f32 %v1107, %v1051
      %v1109 = vand.u32 2147483647, %v1051
      %vm1110 = vcmp.lt.f32.partialorder %v1109, 0.0004427343
      %v1111 = vsel %vm1110, %v1108, %v1105
      %v1112 = vadd.f32 %v1053, 1.0
      %v1113 = vlog2.pop %v1112
      %v1114 = vmul.f32 %v1113, 0.6931472
      %v1115 = vmul.f32 -0.5, %v1053
      %v1116 = vadd.f32 %v1115, 1.0
      %v1117 = vmul.f32 %v1116, %v1053
      %v1118 = vand.u32 2147483647, %v1053
      %vm1119 = vcmp.lt.f32.partialorder %v1118, 0.0004427343
      %v1120 = vsel %vm1119, %v1117, %v1114
      %v1121 = vadd.f32 %v1055, 1.0
      %v1122 = vlog2.pop %v1121
      %v1123 = vmul.f32 %v1122, 0.6931472
      %v1124 = vmul.f32 -0.5, %v1055
      %v1125 = vadd.f32 %v1124, 1.0
      %v1126 = vmul.f32 %v1125, %v1055
      %v1127 = vand.u32 2147483647, %v1055
      %vm1128 = vcmp.lt.f32.partialorder %v1127, 0.0004427343
      %v1129 = vsel %vm1128, %v1126, %v1123
      %v1130 = vadd.f32 %v1057, 1.0
      %v1131 = vlog2.pop %v1130
      %v1132 = vmul.f32 %v1131, 0.6931472
      %v1133 = vmul.f32 -0.5, %v1057
      %v1134 = vadd.f32 %v1133, 1.0
      %v1135 = vmul.f32 %v1134, %v1057
      %v1136 = vand.u32 2147483647, %v1057
      %vm1137 = vcmp.lt.f32.partialorder %v1136, 0.0004427343
      %v1138 = vsel %vm1137, %v1135, %v1132
      %v1139 = vadd.f32 %v1059, 1.0
      %v1140 = vlog2.pop %v1139
      %v1141 = vmul.f32 %v1140, 0.6931472
      %v1142 = vmul.f32 -0.5, %v1059
      %v1143 = vadd.f32 %v1142, 1.0
      %v1144 = vmul.f32 %v1143, %v1059
      %v1145 = vand.u32 2147483647, %v1059
      %vm1146 = vcmp.lt.f32.partialorder %v1145, 0.0004427343
      %v1147 = vsel %vm1146, %v1144, %v1141
      %v1148 = vadd.f32 %v1061, 1.0
      %v1149 = vlog2.pop %v1148
      %v1150 = vmul.f32 %v1149, 0.6931472
      %v1151 = vmul.f32 -0.5, %v1061
      %v1152 = vadd.f32 %v1151, 1.0
      %v1153 = vmul.f32 %v1152, %v1061
      %v1154 = vand.u32 2147483647, %v1061
      %vm1155 = vcmp.lt.f32.partialorder %v1154, 0.0004427343
      %v1156 = vsel %vm1155, %v1153, %v1150
      %v1157 = vadd.f32 %v1063, 1.0
      %v1158 = vlog2.pop %v1157
      %v1159 = vmul.f32 %v1158, 0.6931472
      %v1160 = vmul.f32 -0.5, %v1063
      %v1161 = vadd.f32 %v1160, 1.0
      %v1162 = vmul.f32 %v1161, %v1063
      %v1163 = vand.u32 2147483647, %v1063
      %vm1164 = vcmp.lt.f32.partialorder %v1163, 0.0004427343
      %v1165 = vsel %vm1164, %v1162, %v1159
      %v1166 = vadd.f32 %v1065, 1.0
      %v1167 = vlog2.pop %v1166
      %v1168 = vmul.f32 %v1167, 0.6931472
      %v1169 = vmul.f32 -0.5, %v1065
      %v1170 = vadd.f32 %v1169, 1.0
      %v1171 = vmul.f32 %v1170, %v1065
      %v1172 = vand.u32 2147483647, %v1065
      %vm1173 = vcmp.lt.f32.partialorder %v1172, 0.0004427343
      %v1174 = vsel %vm1173, %v1171, %v1168
      %v1175 = vadd.f32 %v1067, 1.0
      %v1176 = vlog2.pop %v1175
      %v1177 = vmul.f32 %v1176, 0.6931472
      %v1178 = vmul.f32 -0.5, %v1067
      %v1179 = vadd.f32 %v1178, 1.0
      %v1180 = vmul.f32 %v1179, %v1067
      %v1181 = vand.u32 2147483647, %v1067
      %vm1182 = vcmp.lt.f32.partialorder %v1181, 0.0004427343
      %v1183 = vsel %vm1182, %v1180, %v1177
      %v1184 = vadd.f32 %v1069, 1.0
      %v1185 = vlog2.pop %v1184
      %v1186 = vmul.f32 %v1185, 0.6931472
      %v1187 = vmul.f32 -0.5, %v1069
      %v1188 = vadd.f32 %v1187, 1.0
      %v1189 = vmul.f32 %v1188, %v1069
      %v1190 = vand.u32 2147483647, %v1069
      %vm1191 = vcmp.lt.f32.partialorder %v1190, 0.0004427343
      %v1192 = vsel %vm1191, %v1189, %v1186
      %v1193 = vadd.f32 %v1071, 1.0
      %v1194 = vlog2.pop %v1193
      %v1195 = vmul.f32 %v1194, 0.6931472
      %v1196 = vmul.f32 -0.5, %v1071
      %v1197 = vadd.f32 %v1196, 1.0
      %v1198 = vmul.f32 %v1197, %v1071
      %v1199 = vand.u32 2147483647, %v1071
      %vm1200 = vcmp.lt.f32.partialorder %v1199, 0.0004427343
      %v1201 = vsel %vm1200, %v1198, %v1195
      %v1202 = vadd.f32 %v1073, 1.0
      %v1203 = vlog2.pop %v1202
      %v1204 = vmul.f32 %v1203, 0.6931472
      %v1205 = vmul.f32 -0.5, %v1073
      %v1206 = vadd.f32 %v1205, 1.0
      %v1207 = vmul.f32 %v1206, %v1073
      %v1208 = vand.u32 2147483647, %v1073
      %vm1209 = vcmp.lt.f32.partialorder %v1208, 0.0004427343
      %v1210 = vsel %vm1209, %v1207, %v1204
      %v1211 = vadd.f32 %v1075, 1.0
      %v1212 = vlog2.pop %v1211
      %v1213 = vmul.f32 %v1212, 0.6931472
      %v1214 = vmul.f32 -0.5, %v1075
      %v1215 = vadd.f32 %v1214, 1.0
      %v1216 = vmul.f32 %v1215, %v1075
      %v1217 = vand.u32 2147483647, %v1075
      %vm1218 = vcmp.lt.f32.partialorder %v1217, 0.0004427343
      %v1219 = vsel %vm1218, %v1216, %v1213
      %v1220 = vadd.f32 %v996, %v1084
      %v1221 = vadd.f32 %v997, %v1093
      %v1222 = vadd.f32 %v998, %v1102
      %v1223 = vadd.f32 %v999, %v1111
      %v1224 = vadd.f32 %v1000, %v1120
      %v1225 = vadd.f32 %v1001, %v1129
      %v1226 = vadd.f32 %v1002, %v1138
      %v1227 = vadd.f32 %v1003, %v1147
      %v1228 = vadd.f32 %v1004, %v1156
      %v1229 = vadd.f32 %v1005, %v1165
      %v1230 = vadd.f32 %v1006, %v1174
      %v1231 = vadd.f32 %v1007, %v1183
      %v1232 = vadd.f32 %v1008, %v1192
      %v1233 = vadd.f32 %v1009, %v1201
      %v1234 = vadd.f32 %v1010, %v1210
      %v1235 = vadd.f32 %v1011, %v1219
      %v1236 = vld [vmem:[%s7] sm:$0xff]
      %v1237 = vld [vmem:[%s7 + $0x8] sm:$0xff]
      %v1238 = vld [vmem:[%s7 + $0x10] sm:$0xff]
      %v1239 = vld [vmem:[%s7 + $0x18] sm:$0xff]
      %v1240 = vld [vmem:[%s7 + $0x20] sm:$0xff]
      %v1241 = vld [vmem:[%s7 + $0x28] sm:$0xff]
      %v1242 = vld [vmem:[%s7 + $0x30] sm:$0xff]
      %v1243 = vld [vmem:[%s7 + $0x38] sm:$0xff]
      %v1244 = vld [vmem:[%s7 + $0x40] sm:$0xff]
      %v1245 = vld [vmem:[%s7 + $0x48] sm:$0xff]
      %v1246 = vld [vmem:[%s7 + $0x50] sm:$0xff]
      %v1247 = vld [vmem:[%s7 + $0x58] sm:$0xff]
      %v1248 = vld [vmem:[%s7 + $0x60] sm:$0xff]
      %v1249 = vld [vmem:[%s7 + $0x68] sm:$0xff]
      %v1250 = vld [vmem:[%s7 + $0x70] sm:$0xff]
      %v1251 = vld [vmem:[%s7 + $0x78] sm:$0xff]
      %v1252 = vld [vmem:[%s5] sm:$0xff]
      %v1253 = vld [vmem:[%s5 + $0x8] sm:$0x3]
      %v1255 = vsel %vm582, %v1253, 0
      %1257 = vmatprep.subr.mxu0 0.0
      %1258 = vmatpush1.msra.mxu0 0.0
      %1259 = vmatprep.subr.mxu0 0.0
      %1260 = vmatpush1.msra.mxu0 0.0
      %1261 = vmatprep.subr.mxu0 0.0
      %1262 = vmatpush1.msra.mxu0 0.0
      %1263 = vmatprep.subr.mxu0 0.0
      %1264 = vmatpush1.msra.mxu0 0.0
      %1265 = vmatprep.subr.mxu0 0.0
      %1266 = vmatpush1.msra.mxu0 0.0
      %1267 = vmatprep.subr.mxu0 0.0
      %1268 = vmatpush1.msra.mxu0 0.0
      %1269 = vmatprep.subr.mxu0 0.0
      %1270 = vmatpush1.msra.mxu0 0.0
      %1271 = vmatprep.subr.mxu0 0.0
      %1272 = vmatpush1.msra.mxu0 0.0
      %1273 = vmatprep.subr.mxu0 0.0
      %1274 = vmatpush1.msra.mxu0 0.0
      %1275 = vmatprep.subr.mxu0 0.0
      %1276 = vmatpush1.msra.mxu0 0.0
      %1277 = vmatprep.subr.mxu0 0.0
      %1278 = vmatpush1.msra.mxu0 0.0
      %1279 = vmatprep.subr.mxu0 0.0
      %1280 = vmatpush1.msra.mxu0 0.0
      %1281 = vmatprep.subr.mxu0 0.0
      %1282 = vmatpush1.msra.mxu0 0.0
      %1283 = vmatprep.subr.mxu0 0.0
      %1284 = vmatpush1.msra.mxu0 0.0
      %1285 = vmatprep.subr.mxu0 0.0
      %1286 = vmatpush1.msra.mxu0 %v1255
      %1287 = vmatprep.subr.mxu0 0.0
      %1288 = vmatpush1.msra.mxu0 %v1252
      %1289 = vmatprep.subr.mxu0 0.0
      %1290 = vmatpush2.msra.mxu0 0.0
      %1291 = vmatprep.subr.mxu0 0.0
      %1292 = vmatpush2.msra.mxu0 0.0
      %1293 = vmatprep.subr.mxu0 0.0
      %1294 = vmatpush2.msra.mxu0 0.0
      %1295 = vmatprep.subr.mxu0 0.0
      %1296 = vmatpush2.msra.mxu0 0.0
      %1297 = vmatprep.subr.mxu0 0.0
      %1298 = vmatpush2.msra.mxu0 0.0
      %1299 = vmatprep.subr.mxu0 0.0
      %1300 = vmatpush2.msra.mxu0 0.0
      %1301 = vmatprep.subr.mxu0 0.0
      %1302 = vmatpush2.msra.mxu0 0.0
      %1303 = vmatprep.subr.mxu0 0.0
      %1304 = vmatpush2.msra.mxu0 0.0
      %1305 = vmatprep.subr.mxu0 0.0
      %1306 = vmatpush2.msra.mxu0 0.0
      %1307 = vmatprep.subr.mxu0 0.0
      %1308 = vmatpush2.msra.mxu0 0.0
      %1309 = vmatprep.subr.mxu0 0.0
      %1310 = vmatpush2.msra.mxu0 0.0
      %1311 = vmatprep.subr.mxu0 0.0
      %1312 = vmatpush2.msra.mxu0 0.0
      %1313 = vmatprep.subr.mxu0 0.0
      %1314 = vmatpush2.msra.mxu0 0.0
      %1315 = vmatprep.subr.mxu0 0.0
      %1316 = vmatpush2.msra.mxu0 0.0
      %1317 = vmatprep.subr.mxu0 0.0
      %1318 = vmatpush2.msra.mxu0 0.0
      %1319 = vmatprep.subr.mxu0 0.0
      %1320 = vmatpush2.msra.mxu0 0.0
      %1321 = vmatprep.mubr.f32.mxu0 0.0
      %1322 = vmatmul.mubr.f32.gmra.mxu0 %v535
      %v1323 = vpop.f32.mrf.mxu0
      %v1324 = vadd.f32 0.0, %v1323
      %v1325 = vpop.f32.mrf.mxu0
      %1326 = vmatprep.mubr.f32.mxu0 0.0
      %1327 = vmatmul.mubr.f32.gmra.mxu0 %v538
      %v1328 = vpop.f32.mrf.mxu0
      %v1329 = vadd.f32 0.0, %v1328
      %v1330 = vpop.f32.mrf.mxu0
      %1331 = vmatprep.mubr.f32.mxu0 0.0
      %1332 = vmatmul.mubr.f32.gmra.mxu0 %v541
      %v1333 = vpop.f32.mrf.mxu0
      %v1334 = vadd.f32 0.0, %v1333
      %v1335 = vpop.f32.mrf.mxu0
      %1336 = vmatprep.mubr.f32.mxu0 0.0
      %1337 = vmatmul.mubr.f32.gmra.mxu0 %v544
      %v1338 = vpop.f32.mrf.mxu0
      %v1339 = vadd.f32 0.0, %v1338
      %v1340 = vpop.f32.mrf.mxu0
      %1341 = vmatprep.mubr.f32.mxu0 0.0
      %1342 = vmatmul.mubr.f32.gmra.mxu0 %v547
      %v1343 = vpop.f32.mrf.mxu0
      %v1344 = vadd.f32 0.0, %v1343
      %v1345 = vpop.f32.mrf.mxu0
      %1346 = vmatprep.mubr.f32.mxu0 0.0
      %1347 = vmatmul.mubr.f32.gmra.mxu0 %v550
      %v1348 = vpop.f32.mrf.mxu0
      %v1349 = vadd.f32 0.0, %v1348
      %v1350 = vpop.f32.mrf.mxu0
      %1351 = vmatprep.mubr.f32.mxu0 0.0
      %1352 = vmatmul.mubr.f32.gmra.mxu0 %v553
      %v1353 = vpop.f32.mrf.mxu0
      %v1354 = vadd.f32 0.0, %v1353
      %v1355 = vpop.f32.mrf.mxu0
      %1356 = vmatprep.mubr.f32.mxu0 0.0
      %1357 = vmatmul.mubr.f32.gmra.mxu0 %v556
      %v1358 = vpop.f32.mrf.mxu0
      %v1359 = vadd.f32 0.0, %v1358
      %v1360 = vpop.f32.mrf.mxu0
      %1361 = vmatprep.mubr.f32.mxu0 0.0
      %1362 = vmatmul.mubr.f32.gmra.mxu0 %v559
      %v1363 = vpop.f32.mrf.mxu0
      %v1364 = vadd.f32 0.0, %v1363
      %v1365 = vpop.f32.mrf.mxu0
      %1366 = vmatprep.mubr.f32.mxu0 0.0
      %1367 = vmatmul.mubr.f32.gmra.mxu0 %v562
      %v1368 = vpop.f32.mrf.mxu0
      %v1369 = vadd.f32 0.0, %v1368
      %v1370 = vpop.f32.mrf.mxu0
      %1371 = vmatprep.mubr.f32.mxu0 0.0
      %1372 = vmatmul.mubr.f32.gmra.mxu0 %v565
      %v1373 = vpop.f32.mrf.mxu0
      %v1374 = vadd.f32 0.0, %v1373
      %v1375 = vpop.f32.mrf.mxu0
      %1376 = vmatprep.mubr.f32.mxu0 0.0
      %1377 = vmatmul.mubr.f32.gmra.mxu0 %v568
      %v1378 = vpop.f32.mrf.mxu0
      %v1379 = vadd.f32 0.0, %v1378
      %v1380 = vpop.f32.mrf.mxu0
      %1381 = vmatprep.mubr.f32.mxu0 0.0
      %1382 = vmatmul.mubr.f32.gmra.mxu0 %v571
      %v1383 = vpop.f32.mrf.mxu0
      %v1384 = vadd.f32 0.0, %v1383
      %v1385 = vpop.f32.mrf.mxu0
      %1386 = vmatprep.mubr.f32.mxu0 0.0
      %1387 = vmatmul.mubr.f32.gmra.mxu0 %v574
      %v1388 = vpop.f32.mrf.mxu0
      %v1389 = vadd.f32 0.0, %v1388
      %v1390 = vpop.f32.mrf.mxu0
      %1391 = vmatprep.mubr.f32.mxu0 0.0
      %1392 = vmatmul.mubr.f32.gmra.mxu0 %v577
      %v1393 = vpop.f32.mrf.mxu0
      %v1394 = vadd.f32 0.0, %v1393
      %v1395 = vpop.f32.mrf.mxu0
      %1396 = vmatprep.mubr.f32.mxu0 0.0
      %1397 = vmatmul.mubr.f32.gmra.mxu0 %v580
      %v1398 = vpop.f32.mrf.mxu0
      %v1399 = vadd.f32 0.0, %v1398
      %v1400 = vpop.f32.mrf.mxu0
      %1401 = vdwg.mxu0
      %v1402 = vld [vmem:[%s6] sm:$0x1]
      %v1404 = vlaneseq
      %v1405 = vshrl.u32 %v1404, 7
      %v1406 = vsub.s32 0, %v1405
      %v1407 = vrot.slane %v1402, %v1406
      %1409 = vmatprep.subr.mxu0 0.0
      %1410 = vmatpush1.xpose.msra.mxu0 %v1251
      %1411 = vmatprep.subr.mxu0 0.0
      %1412 = vmatpush1.xpose.msra.mxu0 %v1250
      %1413 = vmatprep.subr.mxu0 0.0
      %1414 = vmatpush1.xpose.msra.mxu0 %v1249
      %1415 = vmatprep.subr.mxu0 0.0
      %1416 = vmatpush1.xpose.msra.mxu0 %v1248
      %1417 = vmatprep.subr.mxu0 0.0
      %1418 = vmatpush1.xpose.msra.mxu0 %v1247
      %1419 = vmatprep.subr.mxu0 0.0
      %1420 = vmatpush1.xpose.msra.mxu0 %v1246
      %1421 = vmatprep.subr.mxu0 0.0
      %1422 = vmatpush1.xpose.msra.mxu0 %v1245
      %1423 = vmatprep.subr.mxu0 0.0
      %1424 = vmatpush1.xpose.msra.mxu0 %v1244
      %1425 = vmatprep.subr.mxu0 0.0
      %1426 = vmatpush1.xpose.msra.mxu0 %v1243
      %1427 = vmatprep.subr.mxu0 0.0
      %1428 = vmatpush1.xpose.msra.mxu0 %v1242
      %1429 = vmatprep.subr.mxu0 0.0
      %1430 = vmatpush1.xpose.msra.mxu0 %v1241
      %1431 = vmatprep.subr.mxu0 0.0
      %1432 = vmatpush1.xpose.msra.mxu0 %v1240
      %1433 = vmatprep.subr.mxu0 0.0
      %1434 = vmatpush1.xpose.msra.mxu0 %v1239
      %1435 = vmatprep.subr.mxu0 0.0
      %1436 = vmatpush1.xpose.msra.mxu0 %v1238
      %1437 = vmatprep.subr.mxu0 0.0
      %1438 = vmatpush1.xpose.msra.mxu0 %v1237
      %1439 = vmatprep.subr.mxu0 0.0
      %1440 = vmatpush1.xpose.msra.mxu0 %v1236
      %1441 = vmatprep.subr.mxu0 0.0
      %1442 = vmatpush2.xpose.msra.mxu0 0.0
      %1443 = vmatprep.subr.mxu0 0.0
      %1444 = vmatpush2.xpose.msra.mxu0 0.0
      %1445 = vmatprep.subr.mxu0 0.0
      %1446 = vmatpush2.xpose.msra.mxu0 0.0
      %1447 = vmatprep.subr.mxu0 0.0
      %1448 = vmatpush2.xpose.msra.mxu0 0.0
      %1449 = vmatprep.subr.mxu0 0.0
      %1450 = vmatpush2.xpose.msra.mxu0 0.0
      %1451 = vmatprep.subr.mxu0 0.0
      %1452 = vmatpush2.xpose.msra.mxu0 0.0
      %1453 = vmatprep.subr.mxu0 0.0
      %1454 = vmatpush2.xpose.msra.mxu0 0.0
      %1455 = vmatprep.subr.mxu0 0.0
      %1456 = vmatpush2.xpose.msra.mxu0 0.0
      %1457 = vmatprep.subr.mxu0 0.0
      %1458 = vmatpush2.xpose.msra.mxu0 0.0
      %1459 = vmatprep.subr.mxu0 0.0
      %1460 = vmatpush2.xpose.msra.mxu0 0.0
      %1461 = vmatprep.subr.mxu0 0.0
      %1462 = vmatpush2.xpose.msra.mxu0 0.0
      %1463 = vmatprep.subr.mxu0 0.0
      %1464 = vmatpush2.xpose.msra.mxu0 0.0
      %1465 = vmatprep.subr.mxu0 0.0
      %1466 = vmatpush2.xpose.msra.mxu0 0.0
      %1467 = vmatprep.subr.mxu0 0.0
      %1468 = vmatpush2.xpose.msra.mxu0 0.0
      %1469 = vmatprep.subr.mxu0 0.0
      %1470 = vmatpush2.xpose.msra.mxu0 0.0
      %1471 = vmatprep.subr.mxu0 0.0
      %1472 = vmatpush2.xpose.msra.mxu0 0.0
      %1473 = vmatprep.mubr.f32.mxu0 0.0
      %1474 = vmatmul.mubr.f32.gmra.mxu0 %v1220
      %v1475 = vpop.f32.mrf.mxu0
      %v1476 = vadd.f32 %v1407, %v1475
      %v1477 = vpop.f32.mrf.mxu0
      %1478 = vmatprep.mubr.f32.mxu0 0.0
      %1479 = vmatmul.mubr.f32.gmra.mxu0 %v1221
      %v1480 = vpop.f32.mrf.mxu0
      %v1481 = vadd.f32 %v1407, %v1480
      %v1482 = vpop.f32.mrf.mxu0
      %1483 = vmatprep.mubr.f32.mxu0 0.0
      %1484 = vmatmul.mubr.f32.gmra.mxu0 %v1222
      %v1485 = vpop.f32.mrf.mxu0
      %v1486 = vadd.f32 %v1407, %v1485
      %v1487 = vpop.f32.mrf.mxu0
      %1488 = vmatprep.mubr.f32.mxu0 0.0
      %1489 = vmatmul.mubr.f32.gmra.mxu0 %v1223
      %v1490 = vpop.f32.mrf.mxu0
      %v1491 = vadd.f32 %v1407, %v1490
      %v1492 = vpop.f32.mrf.mxu0
      %1493 = vmatprep.mubr.f32.mxu0 0.0
      %1494 = vmatmul.mubr.f32.gmra.mxu0 %v1224
      %v1495 = vpop.f32.mrf.mxu0
      %v1496 = vadd.f32 %v1407, %v1495
      %v1497 = vpop.f32.mrf.mxu0
      %1498 = vmatprep.mubr.f32.mxu0 0.0
      %1499 = vmatmul.mubr.f32.gmra.mxu0 %v1225
      %v1500 = vpop.f32.mrf.mxu0
      %v1501 = vadd.f32 %v1407, %v1500
      %v1502 = vpop.f32.mrf.mxu0
      %1503 = vmatprep.mubr.f32.mxu0 0.0
      %1504 = vmatmul.mubr.f32.gmra.mxu0 %v1226
      %v1505 = vpop.f32.mrf.mxu0
      %v1506 = vadd.f32 %v1407, %v1505
      %v1507 = vpop.f32.mrf.mxu0
      %1508 = vmatprep.mubr.f32.mxu0 0.0
      %1509 = vmatmul.mubr.f32.gmra.mxu0 %v1227
      %v1510 = vpop.f32.mrf.mxu0
      %v1511 = vadd.f32 %v1407, %v1510
      %v1512 = vpop.f32.mrf.mxu0
      %1513 = vmatprep.mubr.f32.mxu0 0.0
      %1514 = vmatmul.mubr.f32.gmra.mxu0 %v1228
      %v1515 = vpop.f32.mrf.mxu0
      %v1516 = vadd.f32 %v1407, %v1515
      %v1517 = vpop.f32.mrf.mxu0
      %1518 = vmatprep.mubr.f32.mxu0 0.0
      %1519 = vmatmul.mubr.f32.gmra.mxu0 %v1229
      %v1520 = vpop.f32.mrf.mxu0
      %v1521 = vadd.f32 %v1407, %v1520
      %v1522 = vpop.f32.mrf.mxu0
      %1523 = vmatprep.mubr.f32.mxu0 0.0
      %1524 = vmatmul.mubr.f32.gmra.mxu0 %v1230
      %v1525 = vpop.f32.mrf.mxu0
      %v1526 = vadd.f32 %v1407, %v1525
      %v1527 = vpop.f32.mrf.mxu0
      %1528 = vmatprep.mubr.f32.mxu0 0.0
      %1529 = vmatmul.mubr.f32.gmra.mxu0 %v1231
      %v1530 = vpop.f32.mrf.mxu0
      %v1531 = vadd.f32 %v1407, %v1530
      %v1532 = vpop.f32.mrf.mxu0
      %1533 = vmatprep.mubr.f32.mxu0 0.0
      %1534 = vmatmul.mubr.f32.gmra.mxu0 %v1232
      %v1535 = vpop.f32.mrf.mxu0
      %v1536 = vadd.f32 %v1407, %v1535
      %v1537 = vpop.f32.mrf.mxu0
      %1538 = vmatprep.mubr.f32.mxu0 0.0
      %1539 = vmatmul.mubr.f32.gmra.mxu0 %v1233
      %v1540 = vpop.f32.mrf.mxu0
      %v1541 = vadd.f32 %v1407, %v1540
      %v1542 = vpop.f32.mrf.mxu0
      %1543 = vmatprep.mubr.f32.mxu0 0.0
      %1544 = vmatmul.mubr.f32.gmra.mxu0 %v1234
      %v1545 = vpop.f32.mrf.mxu0
      %v1546 = vadd.f32 %v1407, %v1545
      %v1547 = vpop.f32.mrf.mxu0
      %1548 = vmatprep.mubr.f32.mxu0 0.0
      %1549 = vmatmul.mubr.f32.gmra.mxu0 %v1235
      %v1550 = vpop.f32.mrf.mxu0
      %v1551 = vadd.f32 %v1407, %v1550
      %v1552 = vpop.f32.mrf.mxu0
      %1553 = vdwg.mxu0
      %v1554 = vmul.f32 %v1324, %v1476
      %v1555 = vmul.f32 %v1329, %v1481
      %v1556 = vmul.f32 %v1334, %v1486
      %v1557 = vmul.f32 %v1339, %v1491
      %v1558 = vmul.f32 %v1344, %v1496
      %v1559 = vmul.f32 %v1349, %v1501
      %v1560 = vmul.f32 %v1354, %v1506
      %v1561 = vmul.f32 %v1359, %v1511
      %v1562 = vmul.f32 %v1364, %v1516
      %v1563 = vmul.f32 %v1369, %v1521
      %v1564 = vmul.f32 %v1374, %v1526
      %v1565 = vmul.f32 %v1379, %v1531
      %v1566 = vmul.f32 %v1384, %v1536
      %v1567 = vmul.f32 %v1389, %v1541
      %v1568 = vmul.f32 %v1394, %v1546
      %v1569 = vmul.f32 %v1399, %v1551
      %v1570 = vmax.f32 %v1554, 0.0
      %v1571 = vmax.f32 %v1555, 0.0
      %v1572 = vmax.f32 %v1556, 0.0
      %v1573 = vmax.f32 %v1557, 0.0
      %v1574 = vmax.f32 %v1558, 0.0
      %v1575 = vmax.f32 %v1559, 0.0
      %v1576 = vmax.f32 %v1560, 0.0
      %v1577 = vmax.f32 %v1561, 0.0
      %v1578 = vmax.f32 %v1562, 0.0
      %v1579 = vmax.f32 %v1563, 0.0
      %v1580 = vmax.f32 %v1564, 0.0
      %v1581 = vmax.f32 %v1565, 0.0
      %v1582 = vmax.f32 %v1566, 0.0
      %v1583 = vmax.f32 %v1567, 0.0
      %v1584 = vmax.f32 %v1568, 0.0
      %v1585 = vmax.f32 %v1569, 0.0
      %v1586 = vand.u32 2147483647, %v1554
      %v1587 = vand.u32 2147483647, %v1555
      %v1588 = vand.u32 2147483647, %v1556
      %v1589 = vand.u32 2147483647, %v1557
      %v1590 = vand.u32 2147483647, %v1558
      %v1591 = vand.u32 2147483647, %v1559
      %v1592 = vand.u32 2147483647, %v1560
      %v1593 = vand.u32 2147483647, %v1561
      %v1594 = vand.u32 2147483647, %v1562
      %v1595 = vand.u32 2147483647, %v1563
      %v1596 = vand.u32 2147483647, %v1564
      %v1597 = vand.u32 2147483647, %v1565
      %v1598 = vand.u32 2147483647, %v1566
      %v1599 = vand.u32 2147483647, %v1567
      %v1600 = vand.u32 2147483647, %v1568
      %v1601 = vand.u32 2147483647, %v1569
      %v1602 = vsub.f32 0.0, %v1586
      %v1603 = vsub.f32 0.0, %v1587
      %v1604 = vsub.f32 0.0, %v1588
      %v1605 = vsub.f32 0.0, %v1589
      %v1606 = vsub.f32 0.0, %v1590
      %v1607 = vsub.f32 0.0, %v1591
      %v1608 = vsub.f32 0.0, %v1592
      %v1609 = vsub.f32 0.0, %v1593
      %v1610 = vsub.f32 0.0, %v1594
      %v1611 = vsub.f32 0.0, %v1595
      %v1612 = vsub.f32 0.0, %v1596
      %v1613 = vsub.f32 0.0, %v1597
      %v1614 = vsub.f32 0.0, %v1598
      %v1615 = vsub.f32 0.0, %v1599
      %v1616 = vsub.f32 0.0, %v1600
      %v1617 = vsub.f32 0.0, %v1601
      %v1618 = vmul.f32 %v1602, 1.442695
      %v1619 = vpow.pop %v1618
      %v1620 = vmul.f32 %v1603, 1.442695
      %v1621 = vpow.pop %v1620
      %v1622 = vmul.f32 %v1604, 1.442695
      %v1623 = vpow.pop %v1622
      %v1624 = vmul.f32 %v1605, 1.442695
      %v1625 = vpow.pop %v1624
      %v1626 = vmul.f32 %v1606, 1.442695
      %v1627 = vpow.pop %v1626
      %v1628 = vmul.f32 %v1607, 1.442695
      %v1629 = vpow.pop %v1628
      %v1630 = vmul.f32 %v1608, 1.442695
      %v1631 = vpow.pop %v1630
      %v1632 = vmul.f32 %v1609, 1.442695
      %v1633 = vpow.pop %v1632
      %v1634 = vmul.f32 %v1610, 1.442695
      %v1635 = vpow.pop %v1634
      %v1636 = vmul.f32 %v1611, 1.442695
      %v1637 = vpow.pop %v1636
      %v1638 = vmul.f32 %v1612, 1.442695
      %v1639 = vpow.pop %v1638
      %v1640 = vmul.f32 %v1613, 1.442695
      %v1641 = vpow.pop %v1640
      %v1642 = vmul.f32 %v1614, 1.442695
      %v1643 = vpow.pop %v1642
      %v1644 = vmul.f32 %v1615, 1.442695
      %v1645 = vpow.pop %v1644
      %v1646 = vmul.f32 %v1616, 1.442695
      %v1647 = vpow.pop %v1646
      %v1648 = vmul.f32 %v1617, 1.442695
      %v1649 = vpow.pop %v1648
      %v1650 = vadd.f32 %v1619, 1.0
      %v1651 = vlog2.pop %v1650
      %v1652 = vmul.f32 %v1651, 0.6931472
      %v1653 = vmul.f32 -0.5, %v1619
      %v1654 = vadd.f32 %v1653, 1.0
      %v1655 = vmul.f32 %v1654, %v1619
      %v1656 = vand.u32 2147483647, %v1619
      %vm1657 = vcmp.lt.f32.partialorder %v1656, 0.0004427343
      %v1658 = vsel %vm1657, %v1655, %v1652
      %v1659 = vadd.f32 %v1621, 1.0
      %v1660 = vlog2.pop %v1659
      %v1661 = vmul.f32 %v1660, 0.6931472
      %v1662 = vmul.f32 -0.5, %v1621
      %v1663 = vadd.f32 %v1662, 1.0
      %v1664 = vmul.f32 %v1663, %v1621
      %v1665 = vand.u32 2147483647, %v1621
      %vm1666 = vcmp.lt.f32.partialorder %v1665, 0.0004427343
      %v1667 = vsel %vm1666, %v1664, %v1661
      %v1668 = vadd.f32 %v1623, 1.0
      %v1669 = vlog2.pop %v1668
      %v1670 = vmul.f32 %v1669, 0.6931472
      %v1671 = vmul.f32 -0.5, %v1623
      %v1672 = vadd.f32 %v1671, 1.0
      %v1673 = vmul.f32 %v1672, %v1623
      %v1674 = vand.u32 2147483647, %v1623
      %vm1675 = vcmp.lt.f32.partialorder %v1674, 0.0004427343
      %v1676 = vsel %vm1675, %v1673, %v1670
      %v1677 = vadd.f32 %v1625, 1.0
      %v1678 = vlog2.pop %v1677
      %v1679 = vmul.f32 %v1678, 0.6931472
      %v1680 = vmul.f32 -0.5, %v1625
      %v1681 = vadd.f32 %v1680, 1.0
      %v1682 = vmul.f32 %v1681, %v1625
      %v1683 = vand.u32 2147483647, %v1625
      %vm1684 = vcmp.lt.f32.partialorder %v1683, 0.0004427343
      %v1685 = vsel %vm1684, %v1682, %v1679
      %v1686 = vadd.f32 %v1627, 1.0
      %v1687 = vlog2.pop %v1686
      %v1688 = vmul.f32 %v1687, 0.6931472
      %v1689 = vmul.f32 -0.5, %v1627
      %v1690 = vadd.f32 %v1689, 1.0
      %v1691 = vmul.f32 %v1690, %v1627
      %v1692 = vand.u32 2147483647, %v1627
      %vm1693 = vcmp.lt.f32.partialorder %v1692, 0.0004427343
      %v1694 = vsel %vm1693, %v1691, %v1688
      %v1695 = vadd.f32 %v1629, 1.0
      %v1696 = vlog2.pop %v1695
      %v1697 = vmul.f32 %v1696, 0.6931472
      %v1698 = vmul.f32 -0.5, %v1629
      %v1699 = vadd.f32 %v1698, 1.0
      %v1700 = vmul.f32 %v1699, %v1629
      %v1701 = vand.u32 2147483647, %v1629
      %vm1702 = vcmp.lt.f32.partialorder %v1701, 0.0004427343
      %v1703 = vsel %vm1702, %v1700, %v1697
      %v1704 = vadd.f32 %v1631, 1.0
      %v1705 = vlog2.pop %v1704
      %v1706 = vmul.f32 %v1705, 0.6931472
      %v1707 = vmul.f32 -0.5, %v1631
      %v1708 = vadd.f32 %v1707, 1.0
      %v1709 = vmul.f32 %v1708, %v1631
      %v1710 = vand.u32 2147483647, %v1631
      %vm1711 = vcmp.lt.f32.partialorder %v1710, 0.0004427343
      %v1712 = vsel %vm1711, %v1709, %v1706
      %v1713 = vadd.f32 %v1633, 1.0
      %v1714 = vlog2.pop %v1713
      %v1715 = vmul.f32 %v1714, 0.6931472
      %v1716 = vmul.f32 -0.5, %v1633
      %v1717 = vadd.f32 %v1716, 1.0
      %v1718 = vmul.f32 %v1717, %v1633
      %v1719 = vand.u32 2147483647, %v1633
      %vm1720 = vcmp.lt.f32.partialorder %v1719, 0.0004427343
      %v1721 = vsel %vm1720, %v1718, %v1715
      %v1722 = vadd.f32 %v1635, 1.0
      %v1723 = vlog2.pop %v1722
      %v1724 = vmul.f32 %v1723, 0.6931472
      %v1725 = vmul.f32 -0.5, %v1635
      %v1726 = vadd.f32 %v1725, 1.0
      %v1727 = vmul.f32 %v1726, %v1635
      %v1728 = vand.u32 2147483647, %v1635
      %vm1729 = vcmp.lt.f32.partialorder %v1728, 0.0004427343
      %v1730 = vsel %vm1729, %v1727, %v1724
      %v1731 = vadd.f32 %v1637, 1.0
      %v1732 = vlog2.pop %v1731
      %v1733 = vmul.f32 %v1732, 0.6931472
      %v1734 = vmul.f32 -0.5, %v1637
      %v1735 = vadd.f32 %v1734, 1.0
      %v1736 = vmul.f32 %v1735, %v1637
      %v1737 = vand.u32 2147483647, %v1637
      %vm1738 = vcmp.lt.f32.partialorder %v1737, 0.0004427343
      %v1739 = vsel %vm1738, %v1736, %v1733
      %v1740 = vadd.f32 %v1639, 1.0
      %v1741 = vlog2.pop %v1740
      %v1742 = vmul.f32 %v1741, 0.6931472
      %v1743 = vmul.f32 -0.5, %v1639
      %v1744 = vadd.f32 %v1743, 1.0
      %v1745 = vmul.f32 %v1744, %v1639
      %v1746 = vand.u32 2147483647, %v1639
      %vm1747 = vcmp.lt.f32.partialorder %v1746, 0.0004427343
      %v1748 = vsel %vm1747, %v1745, %v1742
      %v1749 = vadd.f32 %v1641, 1.0
      %v1750 = vlog2.pop %v1749
      %v1751 = vmul.f32 %v1750, 0.6931472
      %v1752 = vmul.f32 -0.5, %v1641
      %v1753 = vadd.f32 %v1752, 1.0
      %v1754 = vmul.f32 %v1753, %v1641
      %v1755 = vand.u32 2147483647, %v1641
      %vm1756 = vcmp.lt.f32.partialorder %v1755, 0.0004427343
      %v1757 = vsel %vm1756, %v1754, %v1751
      %v1758 = vadd.f32 %v1643, 1.0
      %v1759 = vlog2.pop %v1758
      %v1760 = vmul.f32 %v1759, 0.6931472
      %v1761 = vmul.f32 -0.5, %v1643
      %v1762 = vadd.f32 %v1761, 1.0
      %v1763 = vmul.f32 %v1762, %v1643
      %v1764 = vand.u32 2147483647, %v1643
      %vm1765 = vcmp.lt.f32.partialorder %v1764, 0.0004427343
      %v1766 = vsel %vm1765, %v1763, %v1760
      %v1767 = vadd.f32 %v1645, 1.0
      %v1768 = vlog2.pop %v1767
      %v1769 = vmul.f32 %v1768, 0.6931472
      %v1770 = vmul.f32 -0.5, %v1645
      %v1771 = vadd.f32 %v1770, 1.0
      %v1772 = vmul.f32 %v1771, %v1645
      %v1773 = vand.u32 2147483647, %v1645
      %vm1774 = vcmp.lt.f32.partialorder %v1773, 0.0004427343
      %v1775 = vsel %vm1774, %v1772, %v1769
      %v1776 = vadd.f32 %v1647, 1.0
      %v1777 = vlog2.pop %v1776
      %v1778 = vmul.f32 %v1777, 0.6931472
      %v1779 = vmul.f32 -0.5, %v1647
      %v1780 = vadd.f32 %v1779, 1.0
      %v1781 = vmul.f32 %v1780, %v1647
      %v1782 = vand.u32 2147483647, %v1647
      %vm1783 = vcmp.lt.f32.partialorder %v1782, 0.0004427343
      %v1784 = vsel %vm1783, %v1781, %v1778
      %v1785 = vadd.f32 %v1649, 1.0
      %v1786 = vlog2.pop %v1785
      %v1787 = vmul.f32 %v1786, 0.6931472
      %v1788 = vmul.f32 -0.5, %v1649
      %v1789 = vadd.f32 %v1788, 1.0
      %v1790 = vmul.f32 %v1789, %v1649
      %v1791 = vand.u32 2147483647, %v1649
      %vm1792 = vcmp.lt.f32.partialorder %v1791, 0.0004427343
      %v1793 = vsel %vm1792, %v1790, %v1787
      %v1794 = vadd.f32 %v1570, %v1658
      %v1795 = vadd.f32 %v1571, %v1667
      %v1796 = vadd.f32 %v1572, %v1676
      %v1797 = vadd.f32 %v1573, %v1685
      %v1798 = vadd.f32 %v1574, %v1694
      %v1799 = vadd.f32 %v1575, %v1703
      %v1800 = vadd.f32 %v1576, %v1712
      %v1801 = vadd.f32 %v1577, %v1721
      %v1802 = vadd.f32 %v1578, %v1730
      %v1803 = vadd.f32 %v1579, %v1739
      %v1804 = vadd.f32 %v1580, %v1748
      %v1805 = vadd.f32 %v1581, %v1757
      %v1806 = vadd.f32 %v1582, %v1766
      %v1807 = vadd.f32 %v1583, %v1775
      %v1808 = vadd.f32 %v1584, %v1784
      %v1809 = vadd.f32 %v1585, %v1793
      %v1810 = vld [vmem:[%s8] sm:$0xff]
      %v1811 = vld [vmem:[%s9] sm:$0x1]
      %v1813 = vlaneseq
      %v1814 = vshrl.u32 %v1813, 7
      %v1815 = vsub.s32 0, %v1814
      %v1816 = vrot.slane %v1811, %v1815
      %1818 = vmatprep.subr.mxu0 0.0
      %1819 = vmatpush1.xpose.msra.mxu0 0.0
      %1820 = vmatprep.subr.mxu0 0.0
      %1821 = vmatpush1.xpose.msra.mxu0 0.0
      %1822 = vmatprep.subr.mxu0 0.0
      %1823 = vmatpush1.xpose.msra.mxu0 0.0
      %1824 = vmatprep.subr.mxu0 0.0
      %1825 = vmatpush1.xpose.msra.mxu0 0.0
      %1826 = vmatprep.subr.mxu0 0.0
      %1827 = vmatpush1.xpose.msra.mxu0 0.0
      %1828 = vmatprep.subr.mxu0 0.0
      %1829 = vmatpush1.xpose.msra.mxu0 0.0
      %1830 = vmatprep.subr.mxu0 0.0
      %1831 = vmatpush1.xpose.msra.mxu0 0.0
      %1832 = vmatprep.subr.mxu0 0.0
      %1833 = vmatpush1.xpose.msra.mxu0 0.0
      %1834 = vmatprep.subr.mxu0 0.0
      %1835 = vmatpush1.xpose.msra.mxu0 0.0
      %1836 = vmatprep.subr.mxu0 0.0
      %1837 = vmatpush1.xpose.msra.mxu0 0.0
      %1838 = vmatprep.subr.mxu0 0.0
      %1839 = vmatpush1.xpose.msra.mxu0 0.0
      %1840 = vmatprep.subr.mxu0 0.0
      %1841 = vmatpush1.xpose.msra.mxu0 0.0
      %1842 = vmatprep.subr.mxu0 0.0
      %1843 = vmatpush1.xpose.msra.mxu0 0.0
      %1844 = vmatprep.subr.mxu0 0.0
      %1845 = vmatpush1.xpose.msra.mxu0 0.0
      %1846 = vmatprep.subr.mxu0 0.0
      %1847 = vmatpush1.xpose.msra.mxu0 0.0
      %1848 = vmatprep.subr.mxu0 0.0
      %1849 = vmatpush1.xpose.msra.mxu0 %v1810
      %1850 = vmatprep.subr.mxu0 0.0
      %1851 = vmatpush2.xpose.msra.mxu0 0.0
      %1852 = vmatprep.subr.mxu0 0.0
      %1853 = vmatpush2.xpose.msra.mxu0 0.0
      %1854 = vmatprep.subr.mxu0 0.0
      %1855 = vmatpush2.xpose.msra.mxu0 0.0
      %1856 = vmatprep.subr.mxu0 0.0
      %1857 = vmatpush2.xpose.msra.mxu0 0.0
      %1858 = vmatprep.subr.mxu0 0.0
      %1859 = vmatpush2.xpose.msra.mxu0 0.0
      %1860 = vmatprep.subr.mxu0 0.0
      %1861 = vmatpush2.xpose.msra.mxu0 0.0
      %1862 = vmatprep.subr.mxu0 0.0
      %1863 = vmatpush2.xpose.msra.mxu0 0.0
      %1864 = vmatprep.subr.mxu0 0.0
      %1865 = vmatpush2.xpose.msra.mxu0 0.0
      %1866 = vmatprep.subr.mxu0 0.0
      %1867 = vmatpush2.xpose.msra.mxu0 0.0
      %1868 = vmatprep.subr.mxu0 0.0
      %1869 = vmatpush2.xpose.msra.mxu0 0.0
      %1870 = vmatprep.subr.mxu0 0.0
      %1871 = vmatpush2.xpose.msra.mxu0 0.0
      %1872 = vmatprep.subr.mxu0 0.0
      %1873 = vmatpush2.xpose.msra.mxu0 0.0
      %1874 = vmatprep.subr.mxu0 0.0
      %1875 = vmatpush2.xpose.msra.mxu0 0.0
      %1876 = vmatprep.subr.mxu0 0.0
      %1877 = vmatpush2.xpose.msra.mxu0 0.0
      %1878 = vmatprep.subr.mxu0 0.0
      %1879 = vmatpush2.xpose.msra.mxu0 0.0
      %1880 = vmatprep.subr.mxu0 0.0
      %1881 = vmatpush2.xpose.msra.mxu0 0.0
      %1882 = vmatprep.mubr.f32.mxu0 0.0
      %1883 = vmatmul.mubr.f32.gmra.mxu0 %v1794
      %v1884 = vpop.f32.mrf.mxu0
      %v1885 = vadd.f32 %v1816, %v1884
      %v1886 = vpop.f32.mrf.mxu0
      %1887 = vmatprep.mubr.f32.mxu0 0.0
      %1888 = vmatmul.mubr.f32.gmra.mxu0 %v1795
      %v1889 = vpop.f32.mrf.mxu0
      %v1890 = vadd.f32 %v1816, %v1889
      %v1891 = vpop.f32.mrf.mxu0
      %1892 = vmatprep.mubr.f32.mxu0 0.0
      %1893 = vmatmul.mubr.f32.gmra.mxu0 %v1796
      %v1894 = vpop.f32.mrf.mxu0
      %v1895 = vadd.f32 %v1816, %v1894
      %v1896 = vpop.f32.mrf.mxu0
      %1897 = vmatprep.mubr.f32.mxu0 0.0
      %1898 = vmatmul.mubr.f32.gmra.mxu0 %v1797
      %v1899 = vpop.f32.mrf.mxu0
      %v1900 = vadd.f32 %v1816, %v1899
      %v1901 = vpop.f32.mrf.mxu0
      %1902 = vmatprep.mubr.f32.mxu0 0.0
      %1903 = vmatmul.mubr.f32.gmra.mxu0 %v1798
      %v1904 = vpop.f32.mrf.mxu0
      %v1905 = vadd.f32 %v1816, %v1904
      %v1906 = vpop.f32.mrf.mxu0
      %1907 = vmatprep.mubr.f32.mxu0 0.0
      %1908 = vmatmul.mubr.f32.gmra.mxu0 %v1799
      %v1909 = vpop.f32.mrf.mxu0
      %v1910 = vadd.f32 %v1816, %v1909
      %v1911 = vpop.f32.mrf.mxu0
      %1912 = vmatprep.mubr.f32.mxu0 0.0
      %1913 = vmatmul.mubr.f32.gmra.mxu0 %v1800
      %v1914 = vpop.f32.mrf.mxu0
      %v1915 = vadd.f32 %v1816, %v1914
      %v1916 = vpop.f32.mrf.mxu0
      %1917 = vmatprep.mubr.f32.mxu0 0.0
      %1918 = vmatmul.mubr.f32.gmra.mxu0 %v1801
      %v1919 = vpop.f32.mrf.mxu0
      %v1920 = vadd.f32 %v1816, %v1919
      %v1921 = vpop.f32.mrf.mxu0
      %1922 = vmatprep.mubr.f32.mxu0 0.0
      %1923 = vmatmul.mubr.f32.gmra.mxu0 %v1802
      %v1924 = vpop.f32.mrf.mxu0
      %v1925 = vadd.f32 %v1816, %v1924
      %v1926 = vpop.f32.mrf.mxu0
      %1927 = vmatprep.mubr.f32.mxu0 0.0
      %1928 = vmatmul.mubr.f32.gmra.mxu0 %v1803
      %v1929 = vpop.f32.mrf.mxu0
      %v1930 = vadd.f32 %v1816, %v1929
      %v1931 = vpop.f32.mrf.mxu0
      %1932 = vmatprep.mubr.f32.mxu0 0.0
      %1933 = vmatmul.mubr.f32.gmra.mxu0 %v1804
      %v1934 = vpop.f32.mrf.mxu0
      %v1935 = vadd.f32 %v1816, %v1934
      %v1936 = vpop.f32.mrf.mxu0
      %1937 = vmatprep.mubr.f32.mxu0 0.0
      %1938 = vmatmul.mubr.f32.gmra.mxu0 %v1805
      %v1939 = vpop.f32.mrf.mxu0
      %v1940 = vadd.f32 %v1816, %v1939
      %v1941 = vpop.f32.mrf.mxu0
      %1942 = vmatprep.mubr.f32.mxu0 0.0
      %1943 = vmatmul.mubr.f32.gmra.mxu0 %v1806
      %v1944 = vpop.f32.mrf.mxu0
      %v1945 = vadd.f32 %v1816, %v1944
      %v1946 = vpop.f32.mrf.mxu0
      %1947 = vmatprep.mubr.f32.mxu0 0.0
      %1948 = vmatmul.mubr.f32.gmra.mxu0 %v1807
      %v1949 = vpop.f32.mrf.mxu0
      %v1950 = vadd.f32 %v1816, %v1949
      %v1951 = vpop.f32.mrf.mxu0
      %1952 = vmatprep.mubr.f32.mxu0 0.0
      %1953 = vmatmul.mubr.f32.gmra.mxu0 %v1808
      %v1954 = vpop.f32.mrf.mxu0
      %v1955 = vadd.f32 %v1816, %v1954
      %v1956 = vpop.f32.mrf.mxu0
      %1957 = vmatprep.mubr.f32.mxu0 0.0
      %1958 = vmatmul.mubr.f32.gmra.mxu0 %v1809
      %v1959 = vpop.f32.mrf.mxu0
      %v1960 = vadd.f32 %v1816, %v1959
      %v1961 = vpop.f32.mrf.mxu0
      %1962 = vdwg.mxu0
      %1963 = vst.msk [vmem:[%s383] sm:$0xff] %vm738, %v1885
      %1964 = vst.msk [vmem:[%s383 + $0x8] sm:$0xff] %vm738, %v1890
      %1965 = vst.msk [vmem:[%s383 + $0x10] sm:$0xff] %vm738, %v1895
      %1966 = vst.msk [vmem:[%s383 + $0x18] sm:$0xff] %vm738, %v1900
      %1967 = vst.msk [vmem:[%s383 + $0x20] sm:$0xff] %vm738, %v1905
      %1968 = vst.msk [vmem:[%s383 + $0x28] sm:$0xff] %vm738, %v1910
      %1969 = vst.msk [vmem:[%s383 + $0x30] sm:$0xff] %vm738, %v1915
      %1970 = vst.msk [vmem:[%s383 + $0x38] sm:$0xff] %vm738, %v1920
      %1971 = vst.msk [vmem:[%s383 + $0x40] sm:$0xff] %vm738, %v1925
      %1972 = vst.msk [vmem:[%s383 + $0x48] sm:$0xff] %vm738, %v1930
      %1973 = vst.msk [vmem:[%s383 + $0x50] sm:$0xff] %vm738, %v1935
      %1974 = vst.msk [vmem:[%s383 + $0x58] sm:$0xff] %vm738, %v1940
      %1975 = vst.msk [vmem:[%s383 + $0x60] sm:$0xff] %vm738, %v1945
      %1976 = vst.msk [vmem:[%s383 + $0x68] sm:$0xff] %vm738, %v1950
      %1977 = vst.msk [vmem:[%s383 + $0x70] sm:$0xff] %vm738, %v1955
      %1978 = vst.msk [vmem:[%s383 + $0x78] sm:$0xff] %vm738, %v1960
      %s1979 = smul.u32 16, %s21
      %p1980 = scmp.lt.s32.totalorder %s1979, 31
      %s1981 = scalar_select %p1980, %s1979, 31
      %s1982 = smul.addr %s1981, 8
      %s1983 = scalar_lea.vmem %s10, %s1982
      // Predicated region
      $region61: #{score_model_forward.1} parent=59 // pred_check
        %p1984 = pneg %p259
      $region62: #{score_model_forward.1} parent=59 // pred_check_branch
        %1986 = sbr.rel (%p1984) target = $region64
      $region63: #{score_model_forward.1} parent=59 // pred_region
        %s1987 = smul.u32 16, %s21
      $region64: #{score_model_forward.1} parent=59 // pred_fallthru
        _
    $region60: #{score_model_forward.1} parent=5 // pred_fallthru
      _
    %p1988 = scmp.le.s32.totalorder 2, %s16
    // Predicated region
    $region65: #{score_model_forward.1} parent=5 // pred_check
      %p1989 = pneg %p1988
    $region66: #{score_model_forward.1} parent=5 // pred_check_branch
      %1991 = sbr.rel (%p1989) target = $region68
    $region67: #{score_model_forward.1} parent=5 // pred_region
      %s1992 = ssub.s32 %s16, 2
      // Predicated region
      $region69: #{score_model_forward.1} parent=67 // pred_check
        %p1993 = pneg %p265
      $region70: #{score_model_forward.1} parent=67 // pred_check_branch
        %1995 = sbr.rel (%p1993) target = $region72
      $region71: #{score_model_forward.1} parent=67 // pred_region
        %s1996 = smul.u32 16, %s22
        %p1997 = scmp.lt.s32.totalorder %s1996, 31
        %s1998 = scalar_select %p1997, %s1996, 31
        %s1999 = smul.addr %s1998, 8
        %s2000 = scalar_lea.vmem %s10, %s1999
      $region72: #{score_model_forward.1} parent=67 // pred_fallthru
        _
    $region68: #{score_model_forward.1} parent=5 // pred_fallthru
      _
  $region6: #{score_model_forward.1} parent=0 // loop_footer
    %s20 = sadd.s32 1, %s16
  $region7: #{score_model_forward.1} parent=0 // loop_footer_branch
    %15 = sbr.rel target = $region3
  $region8: #{score_model_forward.1} parent=0 // loop_exit
    _

</llo_original>
